<compile_context>
chip_gen: v5e
topology: v5e:2x2
jax: 0.10.0
libtpu: 0.0.40
codegen_flags: <defaults>
</compile_context>

<pallas_src>
import math

import jax
import jax.numpy as jnp
from jax import lax
from jax.experimental import pallas as pl
from jax.experimental.pallas import tpu as pltpu


LAYER_DIMS = [(3, 128), (128, 256), (256, 128), (128, 64), (64, 1)]


# ----------------------------- on-chip sign hash ----------------------------- #

def _i32(x):
    """Wrap a python int into signed-int32 range (two's-complement bits preserved)."""
    x &= 0xFFFFFFFF
    return x - (1 << 32) if x >= (1 << 31) else x


_K_ROW = _i32(0x9E3779B1)
_K_COL = _i32(0x85EBCA77)
_K_M1 = _i32(0x7FEB352D)
_K_M2 = _i32(0x846CA68B)
_K_SEED = _i32(0x01000193)


def _rand_signs(shape, row_off, salt, dtype):
    """Deterministic +/-1 tensor from an integer hash of (global row, col, salt).

    Pure int32 VPU ops -> lowers on Mosaic and in interpret mode; statistically
    equivalent to torch's uniform(-1,1).sign() (not bit-exact with host RNG)."""
    r = lax.broadcasted_iota(jnp.int32, shape, 0) + row_off
    c = lax.broadcasted_iota(jnp.int32, shape, 1)
    h = (r * _K_ROW) ^ (c * _K_COL) ^ salt
    h = h ^ ((h >> 16) & 0xFFFF)          # arithmetic shift + mask == logical shift
    h = h * _K_M1
    h = h ^ ((h >> 15) & 0x1FFFF)
    h = h * _K_M2
    h = h ^ ((h >> 16) & 0xFFFF)
    return jnp.where((h & 1) == 0, 1.0, -1.0).astype(dtype)


# ----------------------------- Pallas kernel -------------------------------- #

def basic_model_kernel(seed_ref, x_ref, w0m_ref, wp1_ref, wp2_ref, wp3_ref,
                       bias_ref, out_ref):
    tb = x_ref.shape[0]
    row0 = pl.program_id(0) * tb                 # global row index of this tile
    base = seed_ref[0] * _K_SEED                 # per-call stream offset

    def signs(shape, salt, dtype=jnp.float32):
        return _rand_signs(shape, row0, base + salt, dtype)

    # ---- MCLayer(3 -> 128) on the VPU: h = x @ (W.T * mask) + b   (K = 3)
    wm = w0m_ref[0:3, :] * w0m_ref[3:6, :]                       # (3, 128) = W.T * mask
    h = (x_ref[:, 0:1] * wm[0:1, :]
         + x_ref[:, 1:2] * wm[1:2, :]
         + x_ref[:, 2:3] * wm[2:3, :]
         + bias_ref[0:1, 0:128])                                 # (tb, 128) f32

    # ---- LinearFlipout 1..3 on the MXU: bf16 operands, f32 accumulation.
    def flipout(h, wpack_ref, din, dout, mu_b, delta_b, salt):
        hb = h.astype(jnp.bfloat16)
        si = signs((tb, din), salt, jnp.bfloat16)                # +/-1 exact in bf16
        so = signs((tb, dout), salt + 1)
        mean = jnp.dot(hb, wpack_ref[0:din, :],
                       preferred_element_type=jnp.float32) + mu_b
        pert = (jnp.dot(hb * si, wpack_ref[din:2 * din, :],
                        preferred_element_type=jnp.float32) + delta_b) * so
        return mean + pert

    h = jnp.maximum(flipout(h, wp1_ref, 128, 256,
                            bias_ref[1:2, 0:256], bias_ref[2:3, 0:256], 1), 0.0)
    h = jnp.maximum(flipout(h, wp2_ref, 256, 128,
                            bias_ref[3:4, 0:128], bias_ref[4:5, 0:128], 3), 0.0)
    h = jnp.maximum(flipout(h, wp3_ref, 128, 64,
                            bias_ref[5:6, 0:64], bias_ref[6:7, 0:64], 5), 0.0)

    # ---- Layer 4 (64 -> 1): single VPU multiply + one lane reduction (no MXU).
    #      y = sum(h * (mu_w4 + (si*so)*dl_w4), -1) + mu_b4 + dl_b4*so
    mu_w4 = bias_ref[7:8, 0:64]                                  # (1, 64)
    dl_w4 = bias_ref[8:9, 0:64]                                  # (1, 64)
    mu_b4 = bias_ref[9:10, 0:1]                                  # (1, 1)
    dl_b4 = bias_ref[10:11, 0:1]                                 # (1, 1)
    si4 = signs((tb, 64), 7)
    so4 = signs((tb, 1), 8)                                      # one sign per row
    w4 = mu_w4 + (si4 * so4) * dl_w4                             # (tb, 64)
    y = jnp.sum(h * w4, axis=-1, keepdims=True) + mu_b4 + dl_b4 * so4   # (tb, 1)
    out_ref[...] = y


# ------------------------------ JAX wrapper ---------------------------------- #

def init_params(key):
    """Deterministic parameter init mirroring the PyTorch module's __init__."""
    params = {}
    ks = iter(jax.random.split(key, 64))

    # MCLayer(3, 128): kaiming_uniform(a=sqrt(5)) -> U(-1/sqrt(fan_in), 1/sqrt(fan_in))
    d_in, d_out = LAYER_DIMS[0]
    bound = 1.0 / math.sqrt(d_in)
    w0 = jax.random.uniform(next(ks), (d_out, d_in), jnp.float32, -bound, bound)
    b0 = jax.random.uniform(next(ks), (d_out,), jnp.float32, -bound, bound)
    params["w0_t"] = w0.T                                   # (3, 128)
    params["b0"] = b0                                       # (128,)

    # LinearFlipout layers: mu ~ N(0, 0.1), rho ~ N(-3, 0.1)
    for i, (din, dout) in enumerate(LAYER_DIMS[1:], start=1):
        params[f"mu_w{i}"] = 0.1 * jax.random.normal(next(ks), (dout, din), jnp.float32)
        params[f"mu_b{i}"] = 0.1 * jax.random.normal(next(ks), (dout,), jnp.float32)
        params[f"rho_w{i}"] = -3.0 + 0.1 * jax.random.normal(next(ks), (dout, din), jnp.float32)
        params[f"rho_b{i}"] = -3.0 + 0.1 * jax.random.normal(next(ks), (dout,), jnp.float32)
    return params


def pack_operands(params, key):
    """Sample flipout delta weights (softplus(rho)*eps) and pack all per-layer
    operands into a handful of VMEM-friendly arrays (few, larger DMAs)."""
    ks = iter(jax.random.split(key, 16))
    delta_w, delta_b = {}, {}
    for i, (din, dout) in enumerate(LAYER_DIMS[1:], start=1):
        eps_w = jax.random.normal(next(ks), (dout, din), jnp.float32)
        eps_b = jax.random.normal(next(ks), (dout,), jnp.float32)
        delta_w[i] = jnp.log1p(jnp.exp(params[f"rho_w{i}"])) * eps_w
        delta_b[i] = jnp.log1p(jnp.exp(params[f"rho_b{i}"])) * eps_b

    packed = {"w0_t": params["w0_t"]}
    # MXU layers 1..3: mu_W.T stacked on delta_W.T -> one bf16 (2*din, dout) pack.
    for i in (1, 2, 3):
        packed[f"wpack{i}"] = jnp.concatenate(
            [params[f"mu_w{i}"].T, delta_w[i].T], axis=0).astype(jnp.bfloat16)

    # Single (11, 256) f32 pack: all bias rows + the (1, 64) layer-4 weight rows.
    bp = jnp.zeros((11, 256), jnp.float32)
    bp = bp.at[0, :128].set(params["b0"])
    bp = bp.at[1, :256].set(params["mu_b1"])
    bp = bp.at[2, :256].set(delta_b[1])
    bp = bp.at[3, :128].set(params["mu_b2"])
    bp = bp.at[4, :128].set(delta_b[2])
    bp = bp.at[5, :64].set(params["mu_b3"])
    bp = bp.at[6, :64].set(delta_b[3])
    bp = bp.at[7, :64].set(params["mu_w4"][0])
    bp = bp.at[8, :64].set(delta_w[4][0])
    bp = bp.at[9, 0].set(params["mu_b4"][0])
    bp = bp.at[10, 0].set(delta_b[4][0])
    packed["bias_pack"] = bp
    return packed


def _pick_batch_tile(batch):
    # Biggest tile that still gives >= 2 grid steps (keeps both v7x TCs busy while
    # amortizing the ~0.35us per-step overhead); small batches fall back to one step.
    for tb in (1024, 512, 256, 128, 64, 32, 16, 8):
        if batch >= 2 * tb:
            return tb
    return 8


def basic_model_forward(x, mask, packed, seed=0):
    batch = x.shape[0]
    tb = _pick_batch_tile(batch)
    padded = ((batch + tb - 1) // tb) * tb
    if padded != batch:
        x = jnp.pad(x, ((0, padded - batch), (0, 0)))
    grid = (padded // tb,)

    # MCLayer weight and per-call mask travel in a single pack.
    w0m = jnp.concatenate([packed["w0_t"], mask], axis=0)        # (6, 128)
    seed_arr = jnp.asarray([seed], dtype=jnp.int32)

    resident = lambda i, s: (0, 0)   # weights stay VMEM-resident across batch tiles
    out = pl.pallas_call(
        basic_model_kernel,
        out_shape=jax.ShapeDtypeStruct((padded, 1), jnp.float32),
        grid_spec=pltpu.PrefetchScalarGridSpec(
            num_scalar_prefetch=1,
            grid=grid,
            in_specs=[
                pl.BlockSpec((tb, 3), lambda i, s: (i, 0)),      # activations (tiled)
                pl.BlockSpec((6, 128), resident),                # MCLayer W.T + mask
                pl.BlockSpec((2 * 128, 256), resident),          # layer-1 bf16 pack
                pl.BlockSpec((2 * 256, 128), resident),          # layer-2 bf16 pack
                pl.BlockSpec((2 * 128, 64), resident),           # layer-3 bf16 pack
                pl.BlockSpec((11, 256), resident),               # bias / layer-4 pack
            ],
            out_specs=pl.BlockSpec((tb, 1), lambda i, s: (i, 0)),
        ),
        compiler_params=pltpu.CompilerParams(
            dimension_semantics=("parallel",),
            vmem_limit_bytes=32 * 1024 * 1024),
    )(seed_arr, x, w0m,
      packed["wpack1"], packed["wpack2"], packed["wpack3"], packed["bias_pack"])

    return out[:batch] if padded != batch else out


# --------------------------------- main -------------------------------------- #

if __name__ == "__main__":
    key = jax.random.PRNGKey(0)
    k_param, k_rand, k_x, k_mask = jax.random.split(key, 4)

    batch = 8
    x = jax.random.normal(k_x, (batch, 3), jnp.float32)
    # mask has shape (size_in, size_out) = (3, 128) so that mask.T broadcasts
    # against the (128, 3) MCLayer weight exactly as in the PyTorch code.
    mask = jax.random.bernoulli(k_mask, 0.7, (3, 128)).astype(jnp.float32)

    params = init_params(k_param)
    packed = pack_operands(params, k_rand)

    out = basic_model_forward(x, mask, packed, seed=0)
    out = jax.block_until_ready(out)
    assert out.shape == (batch, 1) and out.dtype == jnp.float32
    print("KERNEL_OK")
</pallas_src>

<mosaic_0001>
module attributes {stable_mosaic.version = 11 : i64} {
  func.func @basic_model_kernel(%arg0: i32, %arg1: memref<1xi32, #tpu.memory_space<smem>>, %arg2: memref<8x3xf32, #tpu.memory_space<vmem>>, %arg3: memref<6x128xf32, #tpu.memory_space<vmem>>, %arg4: memref<256x256xbf16, #tpu.memory_space<vmem>>, %arg5: memref<512x128xbf16, #tpu.memory_space<vmem>>, %arg6: memref<256x64xbf16, #tpu.memory_space<vmem>>, %arg7: memref<11x256xf32, #tpu.memory_space<vmem>>, %arg8: memref<8x1xf32, #tpu.memory_space<vmem>>) attributes {dimension_semantics = [#tpu.dimension_semantics<parallel>], iteration_bounds = array<i64: 1>, scalar_prefetch = 1 : i64, scratch_operands = 0 : i64, tpu.core_type = #tpu.core_type<tc>, window_params = [{transform_indices = @transform_0, window_bounds = array<i64: 8, 3>}, {pipeline_mode = #tpu.pipeline_mode<synchronous>, transform_indices = @transform_1, window_bounds = array<i64: 6, 128>}, {pipeline_mode = #tpu.pipeline_mode<synchronous>, transform_indices = @transform_2, window_bounds = array<i64: 256, 256>}, {pipeline_mode = #tpu.pipeline_mode<synchronous>, transform_indices = @transform_3, window_bounds = array<i64: 512, 128>}, {pipeline_mode = #tpu.pipeline_mode<synchronous>, transform_indices = @transform_4, window_bounds = array<i64: 256, 64>}, {pipeline_mode = #tpu.pipeline_mode<synchronous>, transform_indices = @transform_5, window_bounds = array<i64: 11, 256>}, {transform_indices = @transform_6, window_bounds = array<i64: 8, 1>}]} {
    %c8_i32 = arith.constant 8 : i32
    %0 = arith.muli %arg0, %c8_i32 : i32
    %c0 = arith.constant 0 : index
    %1 = memref.load %arg1[%c0] : memref<1xi32, #tpu.memory_space<smem>>
    %c16777619_i32 = arith.constant 16777619 : i32
    %2 = arith.muli %1, %c16777619_i32 : i32
    %c0_0 = arith.constant 0 : index
    %c0_1 = arith.constant 0 : index
    %3 = vector.load %arg3[%c0_0, %c0_1] : memref<6x128xf32, #tpu.memory_space<vmem>>, vector<3x128xf32>
    %c3 = arith.constant 3 : index
    %c0_2 = arith.constant 0 : index
    %4 = vector.load %arg3[%c3, %c0_2] : memref<6x128xf32, #tpu.memory_space<vmem>>, vector<3x128xf32>
    %5 = arith.mulf %3, %4 : vector<3x128xf32>
    %c0_3 = arith.constant 0 : index
    %c0_4 = arith.constant 0 : index
    %6 = vector.load %arg2[%c0_3, %c0_4] : memref<8x3xf32, #tpu.memory_space<vmem>>, vector<8x1xf32>
    %7 = vector.extract_strided_slice %5 {offsets = [0, 0], sizes = [1, 128], strides = [1, 1]} : vector<3x128xf32> to vector<1x128xf32>
    %8 = vector.broadcast %6 : vector<8x1xf32> to vector<8x128xf32>
    %9 = vector.broadcast %7 : vector<1x128xf32> to vector<8x128xf32>
    %10 = arith.mulf %8, %9 : vector<8x128xf32>
    %c0_5 = arith.constant 0 : index
    %c1 = arith.constant 1 : index
    %11 = vector.load %arg2[%c0_5, %c1] : memref<8x3xf32, #tpu.memory_space<vmem>>, vector<8x1xf32>
    %12 = vector.extract_strided_slice %5 {offsets = [1, 0], sizes = [1, 128], strides = [1, 1]} : vector<3x128xf32> to vector<1x128xf32>
    %13 = vector.broadcast %11 : vector<8x1xf32> to vector<8x128xf32>
    %14 = vector.broadcast %12 : vector<1x128xf32> to vector<8x128xf32>
    %15 = arith.mulf %13, %14 : vector<8x128xf32>
    %16 = arith.addf %10, %15 : vector<8x128xf32>
    %c0_6 = arith.constant 0 : index
    %c2 = arith.constant 2 : index
    %17 = vector.load %arg2[%c0_6, %c2] : memref<8x3xf32, #tpu.memory_space<vmem>>, vector<8x1xf32>
    %18 = vector.extract_strided_slice %5 {offsets = [2, 0], sizes = [1, 128], strides = [1, 1]} : vector<3x128xf32> to vector<1x128xf32>
    %19 = vector.broadcast %17 : vector<8x1xf32> to vector<8x128xf32>
    %20 = vector.broadcast %18 : vector<1x128xf32> to vector<8x128xf32>
    %21 = arith.mulf %19, %20 : vector<8x128xf32>
    %22 = arith.addf %16, %21 : vector<8x128xf32>
    %c0_7 = arith.constant 0 : index
    %c0_8 = arith.constant 0 : index
    %23 = vector.load %arg7[%c0_7, %c0_8] : memref<11x256xf32, #tpu.memory_space<vmem>>, vector<1x128xf32>
    %24 = vector.broadcast %23 : vector<1x128xf32> to vector<8x128xf32>
    %25 = arith.addf %22, %24 : vector<8x128xf32>
    %c1_9 = arith.constant 1 : index
    %c0_10 = arith.constant 0 : index
    %26 = vector.load %arg7[%c1_9, %c0_10] : memref<11x256xf32, #tpu.memory_space<vmem>>, vector<1x256xf32>
    %c2_11 = arith.constant 2 : index
    %c0_12 = arith.constant 0 : index
    %27 = vector.load %arg7[%c2_11, %c0_12] : memref<11x256xf32, #tpu.memory_space<vmem>>, vector<1x256xf32>
    %28 = arith.truncf %25 : vector<8x128xf32> to vector<8x128xbf16>
    %c1_i32 = arith.constant 1 : i32
    %29 = arith.addi %2, %c1_i32 : i32
    %30 = tpu.iota {dimensions = array<i32: 0>} : vector<8x128xi32>
    %31 = vector.broadcast %0 : i32 to vector<8x128xi32>
    %32 = arith.addi %30, %31 : vector<8x128xi32>
    %33 = tpu.iota {dimensions = array<i32: 1>} : vector<8x128xi32>
    %c-1640531535_i32 = arith.constant -1640531535 : i32
    %34 = vector.broadcast %c-1640531535_i32 : i32 to vector<8x128xi32>
    %35 = arith.muli %32, %34 : vector<8x128xi32>
    %c-2048144777_i32 = arith.constant -2048144777 : i32
    %36 = vector.broadcast %c-2048144777_i32 : i32 to vector<8x128xi32>
    %37 = arith.muli %33, %36 : vector<8x128xi32>
    %38 = arith.xori %35, %37 : vector<8x128xi32>
    %39 = vector.broadcast %29 : i32 to vector<8x128xi32>
    %40 = arith.xori %38, %39 : vector<8x128xi32>
    %c16_i32 = arith.constant 16 : i32
    %41 = vector.broadcast %c16_i32 : i32 to vector<8x128xi32>
    %42 = arith.shrsi %40, %41 : vector<8x128xi32>
    %c65535_i32 = arith.constant 65535 : i32
    %43 = vector.broadcast %c65535_i32 : i32 to vector<8x128xi32>
    %44 = arith.andi %42, %43 : vector<8x128xi32>
    %45 = arith.xori %40, %44 : vector<8x128xi32>
    %c2146121005_i32 = arith.constant 2146121005 : i32
    %46 = vector.broadcast %c2146121005_i32 : i32 to vector<8x128xi32>
    %47 = arith.muli %45, %46 : vector<8x128xi32>
    %c15_i32 = arith.constant 15 : i32
    %48 = vector.broadcast %c15_i32 : i32 to vector<8x128xi32>
    %49 = arith.shrsi %47, %48 : vector<8x128xi32>
    %c131071_i32 = arith.constant 131071 : i32
    %50 = vector.broadcast %c131071_i32 : i32 to vector<8x128xi32>
    %51 = arith.andi %49, %50 : vector<8x128xi32>
    %52 = arith.xori %47, %51 : vector<8x128xi32>
    %c-2073254261_i32 = arith.constant -2073254261 : i32
    %53 = vector.broadcast %c-2073254261_i32 : i32 to vector<8x128xi32>
    %54 = arith.muli %52, %53 : vector<8x128xi32>
    %c16_i32_13 = arith.constant 16 : i32
    %55 = vector.broadcast %c16_i32_13 : i32 to vector<8x128xi32>
    %56 = arith.shrsi %54, %55 : vector<8x128xi32>
    %c65535_i32_14 = arith.constant 65535 : i32
    %57 = vector.broadcast %c65535_i32_14 : i32 to vector<8x128xi32>
    %58 = arith.andi %56, %57 : vector<8x128xi32>
    %59 = arith.xori %54, %58 : vector<8x128xi32>
    %c1_i32_15 = arith.constant 1 : i32
    %60 = vector.broadcast %c1_i32_15 : i32 to vector<8x128xi32>
    %61 = arith.andi %59, %60 : vector<8x128xi32>
    %c0_i32 = arith.constant 0 : i32
    %62 = vector.broadcast %c0_i32 : i32 to vector<8x128xi32>
    %63 = arith.cmpi eq, %61, %62 : vector<8x128xi32>
    %cst = arith.constant 1.000000e+00 : f32
    %cst_16 = arith.constant -1.000000e+00 : f32
    %64 = vector.broadcast %cst : f32 to vector<8x128xf32>
    %65 = vector.broadcast %cst_16 : f32 to vector<8x128xf32>
    %66 = arith.select %63, %64, %65 : vector<8x128xi1>, vector<8x128xf32>
    %67 = arith.truncf %66 : vector<8x128xf32> to vector<8x128xbf16>
    %c2_i32 = arith.constant 2 : i32
    %68 = arith.addi %2, %c2_i32 : i32
    %69 = tpu.iota {dimensions = array<i32: 0>} : vector<8x256xi32>
    %70 = vector.broadcast %0 : i32 to vector<8x256xi32>
    %71 = arith.addi %69, %70 : vector<8x256xi32>
    %72 = tpu.iota {dimensions = array<i32: 1>} : vector<8x256xi32>
    %c-1640531535_i32_17 = arith.constant -1640531535 : i32
    %73 = vector.broadcast %c-1640531535_i32_17 : i32 to vector<8x256xi32>
    %74 = arith.muli %71, %73 : vector<8x256xi32>
    %c-2048144777_i32_18 = arith.constant -2048144777 : i32
    %75 = vector.broadcast %c-2048144777_i32_18 : i32 to vector<8x256xi32>
    %76 = arith.muli %72, %75 : vector<8x256xi32>
    %77 = arith.xori %74, %76 : vector<8x256xi32>
    %78 = vector.broadcast %68 : i32 to vector<8x256xi32>
    %79 = arith.xori %77, %78 : vector<8x256xi32>
    %c16_i32_19 = arith.constant 16 : i32
    %80 = vector.broadcast %c16_i32_19 : i32 to vector<8x256xi32>
    %81 = arith.shrsi %79, %80 : vector<8x256xi32>
    %c65535_i32_20 = arith.constant 65535 : i32
    %82 = vector.broadcast %c65535_i32_20 : i32 to vector<8x256xi32>
    %83 = arith.andi %81, %82 : vector<8x256xi32>
    %84 = arith.xori %79, %83 : vector<8x256xi32>
    %c2146121005_i32_21 = arith.constant 2146121005 : i32
    %85 = vector.broadcast %c2146121005_i32_21 : i32 to vector<8x256xi32>
    %86 = arith.muli %84, %85 : vector<8x256xi32>
    %c15_i32_22 = arith.constant 15 : i32
    %87 = vector.broadcast %c15_i32_22 : i32 to vector<8x256xi32>
    %88 = arith.shrsi %86, %87 : vector<8x256xi32>
    %c131071_i32_23 = arith.constant 131071 : i32
    %89 = vector.broadcast %c131071_i32_23 : i32 to vector<8x256xi32>
    %90 = arith.andi %88, %89 : vector<8x256xi32>
    %91 = arith.xori %86, %90 : vector<8x256xi32>
    %c-2073254261_i32_24 = arith.constant -2073254261 : i32
    %92 = vector.broadcast %c-2073254261_i32_24 : i32 to vector<8x256xi32>
    %93 = arith.muli %91, %92 : vector<8x256xi32>
    %c16_i32_25 = arith.constant 16 : i32
    %94 = vector.broadcast %c16_i32_25 : i32 to vector<8x256xi32>
    %95 = arith.shrsi %93, %94 : vector<8x256xi32>
    %c65535_i32_26 = arith.constant 65535 : i32
    %96 = vector.broadcast %c65535_i32_26 : i32 to vector<8x256xi32>
    %97 = arith.andi %95, %96 : vector<8x256xi32>
    %98 = arith.xori %93, %97 : vector<8x256xi32>
    %c1_i32_27 = arith.constant 1 : i32
    %99 = vector.broadcast %c1_i32_27 : i32 to vector<8x256xi32>
    %100 = arith.andi %98, %99 : vector<8x256xi32>
    %c0_i32_28 = arith.constant 0 : i32
    %101 = vector.broadcast %c0_i32_28 : i32 to vector<8x256xi32>
    %102 = arith.cmpi eq, %100, %101 : vector<8x256xi32>
    %cst_29 = arith.constant 1.000000e+00 : f32
    %cst_30 = arith.constant -1.000000e+00 : f32
    %103 = vector.broadcast %cst_29 : f32 to vector<8x256xf32>
    %104 = vector.broadcast %cst_30 : f32 to vector<8x256xf32>
    %105 = arith.select %102, %103, %104 : vector<8x256xi1>, vector<8x256xf32>
    %c0_31 = arith.constant 0 : index
    %c0_32 = arith.constant 0 : index
    %106 = vector.load %arg4[%c0_31, %c0_32] : memref<256x256xbf16, #tpu.memory_space<vmem>>, vector<128x256xbf16>
    %cst_33 = arith.constant dense<0.000000e+00> : vector<8x256xf32>
    %107 = tpu.matmul %28, %106, %cst_33 {dimension_numbers = #tpu.dot_dimension_numbers<[1], [0], [0], [1], [0, 0, 1, 1], [], []>} : vector<8x128xbf16>, vector<128x256xbf16>, vector<8x256xf32> -> vector<8x256xf32>
    %108 = vector.broadcast %26 : vector<1x256xf32> to vector<8x256xf32>
    %109 = arith.addf %107, %108 : vector<8x256xf32>
    %110 = arith.mulf %28, %67 : vector<8x128xbf16>
    %c128 = arith.constant 128 : index
    %c0_34 = arith.constant 0 : index
    %111 = vector.load %arg4[%c128, %c0_34] : memref<256x256xbf16, #tpu.memory_space<vmem>>, vector<128x256xbf16>
    %cst_35 = arith.constant dense<0.000000e+00> : vector<8x256xf32>
    %112 = tpu.matmul %110, %111, %cst_35 {dimension_numbers = #tpu.dot_dimension_numbers<[1], [0], [0], [1], [0, 0, 1, 1], [], []>} : vector<8x128xbf16>, vector<128x256xbf16>, vector<8x256xf32> -> vector<8x256xf32>
    %113 = vector.broadcast %27 : vector<1x256xf32> to vector<8x256xf32>
    %114 = arith.addf %112, %113 : vector<8x256xf32>
    %115 = arith.mulf %114, %105 : vector<8x256xf32>
    %116 = arith.addf %109, %115 : vector<8x256xf32>
    %cst_36 = arith.constant 0.000000e+00 : f32
    %117 = vector.broadcast %cst_36 : f32 to vector<8x256xf32>
    %118 = arith.maximumf %116, %117 : vector<8x256xf32>
    %c3_37 = arith.constant 3 : index
    %c0_38 = arith.constant 0 : index
    %119 = vector.load %arg7[%c3_37, %c0_38] : memref<11x256xf32, #tpu.memory_space<vmem>>, vector<1x128xf32>
    %c4 = arith.constant 4 : index
    %c0_39 = arith.constant 0 : index
    %120 = vector.load %arg7[%c4, %c0_39] : memref<11x256xf32, #tpu.memory_space<vmem>>, vector<1x128xf32>
    %121 = arith.truncf %118 : vector<8x256xf32> to vector<8x256xbf16>
    %c3_i32 = arith.constant 3 : i32
    %122 = arith.addi %2, %c3_i32 : i32
    %123 = tpu.iota {dimensions = array<i32: 0>} : vector<8x256xi32>
    %124 = vector.broadcast %0 : i32 to vector<8x256xi32>
    %125 = arith.addi %123, %124 : vector<8x256xi32>
    %126 = tpu.iota {dimensions = array<i32: 1>} : vector<8x256xi32>
    %c-1640531535_i32_40 = arith.constant -1640531535 : i32
    %127 = vector.broadcast %c-1640531535_i32_40 : i32 to vector<8x256xi32>
    %128 = arith.muli %125, %127 : vector<8x256xi32>
    %c-2048144777_i32_41 = arith.constant -2048144777 : i32
    %129 = vector.broadcast %c-2048144777_i32_41 : i32 to vector<8x256xi32>
    %130 = arith.muli %126, %129 : vector<8x256xi32>
    %131 = arith.xori %128, %130 : vector<8x256xi32>
    %132 = vector.broadcast %122 : i32 to vector<8x256xi32>
    %133 = arith.xori %131, %132 : vector<8x256xi32>
    %c16_i32_42 = arith.constant 16 : i32
    %134 = vector.broadcast %c16_i32_42 : i32 to vector<8x256xi32>
    %135 = arith.shrsi %133, %134 : vector<8x256xi32>
    %c65535_i32_43 = arith.constant 65535 : i32
    %136 = vector.broadcast %c65535_i32_43 : i32 to vector<8x256xi32>
    %137 = arith.andi %135, %136 : vector<8x256xi32>
    %138 = arith.xori %133, %137 : vector<8x256xi32>
    %c2146121005_i32_44 = arith.constant 2146121005 : i32
    %139 = vector.broadcast %c2146121005_i32_44 : i32 to vector<8x256xi32>
    %140 = arith.muli %138, %139 : vector<8x256xi32>
    %c15_i32_45 = arith.constant 15 : i32
    %141 = vector.broadcast %c15_i32_45 : i32 to vector<8x256xi32>
    %142 = arith.shrsi %140, %141 : vector<8x256xi32>
    %c131071_i32_46 = arith.constant 131071 : i32
    %143 = vector.broadcast %c131071_i32_46 : i32 to vector<8x256xi32>
    %144 = arith.andi %142, %143 : vector<8x256xi32>
    %145 = arith.xori %140, %144 : vector<8x256xi32>
    %c-2073254261_i32_47 = arith.constant -2073254261 : i32
    %146 = vector.broadcast %c-2073254261_i32_47 : i32 to vector<8x256xi32>
    %147 = arith.muli %145, %146 : vector<8x256xi32>
    %c16_i32_48 = arith.constant 16 : i32
    %148 = vector.broadcast %c16_i32_48 : i32 to vector<8x256xi32>
    %149 = arith.shrsi %147, %148 : vector<8x256xi32>
    %c65535_i32_49 = arith.constant 65535 : i32
    %150 = vector.broadcast %c65535_i32_49 : i32 to vector<8x256xi32>
    %151 = arith.andi %149, %150 : vector<8x256xi32>
    %152 = arith.xori %147, %151 : vector<8x256xi32>
    %c1_i32_50 = arith.constant 1 : i32
    %153 = vector.broadcast %c1_i32_50 : i32 to vector<8x256xi32>
    %154 = arith.andi %152, %153 : vector<8x256xi32>
    %c0_i32_51 = arith.constant 0 : i32
    %155 = vector.broadcast %c0_i32_51 : i32 to vector<8x256xi32>
    %156 = arith.cmpi eq, %154, %155 : vector<8x256xi32>
    %cst_52 = arith.constant 1.000000e+00 : f32
    %cst_53 = arith.constant -1.000000e+00 : f32
    %157 = vector.broadcast %cst_52 : f32 to vector<8x256xf32>
    %158 = vector.broadcast %cst_53 : f32 to vector<8x256xf32>
    %159 = arith.select %156, %157, %158 : vector<8x256xi1>, vector<8x256xf32>
    %160 = arith.truncf %159 : vector<8x256xf32> to vector<8x256xbf16>
    %c4_i32 = arith.constant 4 : i32
    %161 = arith.addi %2, %c4_i32 : i32
    %162 = tpu.iota {dimensions = array<i32: 0>} : vector<8x128xi32>
    %163 = vector.broadcast %0 : i32 to vector<8x128xi32>
    %164 = arith.addi %162, %163 : vector<8x128xi32>
    %165 = tpu.iota {dimensions = array<i32: 1>} : vector<8x128xi32>
    %c-1640531535_i32_54 = arith.constant -1640531535 : i32
    %166 = vector.broadcast %c-1640531535_i32_54 : i32 to vector<8x128xi32>
    %167 = arith.muli %164, %166 : vector<8x128xi32>
    %c-2048144777_i32_55 = arith.constant -2048144777 : i32
    %168 = vector.broadcast %c-2048144777_i32_55 : i32 to vector<8x128xi32>
    %169 = arith.muli %165, %168 : vector<8x128xi32>
    %170 = arith.xori %167, %169 : vector<8x128xi32>
    %171 = vector.broadcast %161 : i32 to vector<8x128xi32>
    %172 = arith.xori %170, %171 : vector<8x128xi32>
    %c16_i32_56 = arith.constant 16 : i32
    %173 = vector.broadcast %c16_i32_56 : i32 to vector<8x128xi32>
    %174 = arith.shrsi %172, %173 : vector<8x128xi32>
    %c65535_i32_57 = arith.constant 65535 : i32
    %175 = vector.broadcast %c65535_i32_57 : i32 to vector<8x128xi32>
    %176 = arith.andi %174, %175 : vector<8x128xi32>
    %177 = arith.xori %172, %176 : vector<8x128xi32>
    %c2146121005_i32_58 = arith.constant 2146121005 : i32
    %178 = vector.broadcast %c2146121005_i32_58 : i32 to vector<8x128xi32>
    %179 = arith.muli %177, %178 : vector<8x128xi32>
    %c15_i32_59 = arith.constant 15 : i32
    %180 = vector.broadcast %c15_i32_59 : i32 to vector<8x128xi32>
    %181 = arith.shrsi %179, %180 : vector<8x128xi32>
    %c131071_i32_60 = arith.constant 131071 : i32
    %182 = vector.broadcast %c131071_i32_60 : i32 to vector<8x128xi32>
    %183 = arith.andi %181, %182 : vector<8x128xi32>
    %184 = arith.xori %179, %183 : vector<8x128xi32>
    %c-2073254261_i32_61 = arith.constant -2073254261 : i32
    %185 = vector.broadcast %c-2073254261_i32_61 : i32 to vector<8x128xi32>
    %186 = arith.muli %184, %185 : vector<8x128xi32>
    %c16_i32_62 = arith.constant 16 : i32
    %187 = vector.broadcast %c16_i32_62 : i32 to vector<8x128xi32>
    %188 = arith.shrsi %186, %187 : vector<8x128xi32>
    %c65535_i32_63 = arith.constant 65535 : i32
    %189 = vector.broadcast %c65535_i32_63 : i32 to vector<8x128xi32>
    %190 = arith.andi %188, %189 : vector<8x128xi32>
    %191 = arith.xori %186, %190 : vector<8x128xi32>
    %c1_i32_64 = arith.constant 1 : i32
    %192 = vector.broadcast %c1_i32_64 : i32 to vector<8x128xi32>
    %193 = arith.andi %191, %192 : vector<8x128xi32>
    %c0_i32_65 = arith.constant 0 : i32
    %194 = vector.broadcast %c0_i32_65 : i32 to vector<8x128xi32>
    %195 = arith.cmpi eq, %193, %194 : vector<8x128xi32>
    %cst_66 = arith.constant 1.000000e+00 : f32
    %cst_67 = arith.constant -1.000000e+00 : f32
    %196 = vector.broadcast %cst_66 : f32 to vector<8x128xf32>
    %197 = vector.broadcast %cst_67 : f32 to vector<8x128xf32>
    %198 = arith.select %195, %196, %197 : vector<8x128xi1>, vector<8x128xf32>
    %c0_68 = arith.constant 0 : index
    %c0_69 = arith.constant 0 : index
    %199 = vector.load %arg5[%c0_68, %c0_69] : memref<512x128xbf16, #tpu.memory_space<vmem>>, vector<256x128xbf16>
    %cst_70 = arith.constant dense<0.000000e+00> : vector<8x128xf32>
    %200 = tpu.matmul %121, %199, %cst_70 {dimension_numbers = #tpu.dot_dimension_numbers<[1], [0], [0], [1], [0, 0, 1, 1], [], []>} : vector<8x256xbf16>, vector<256x128xbf16>, vector<8x128xf32> -> vector<8x128xf32>
    %201 = vector.broadcast %119 : vector<1x128xf32> to vector<8x128xf32>
    %202 = arith.addf %200, %201 : vector<8x128xf32>
    %203 = arith.mulf %121, %160 : vector<8x256xbf16>
    %c256 = arith.constant 256 : index
    %c0_71 = arith.constant 0 : index
    %204 = vector.load %arg5[%c256, %c0_71] : memref<512x128xbf16, #tpu.memory_space<vmem>>, vector<256x128xbf16>
    %cst_72 = arith.constant dense<0.000000e+00> : vector<8x128xf32>
    %205 = tpu.matmul %203, %204, %cst_72 {dimension_numbers = #tpu.dot_dimension_numbers<[1], [0], [0], [1], [0, 0, 1, 1], [], []>} : vector<8x256xbf16>, vector<256x128xbf16>, vector<8x128xf32> -> vector<8x128xf32>
    %206 = vector.broadcast %120 : vector<1x128xf32> to vector<8x128xf32>
    %207 = arith.addf %205, %206 : vector<8x128xf32>
    %208 = arith.mulf %207, %198 : vector<8x128xf32>
    %209 = arith.addf %202, %208 : vector<8x128xf32>
    %cst_73 = arith.constant 0.000000e+00 : f32
    %210 = vector.broadcast %cst_73 : f32 to vector<8x128xf32>
    %211 = arith.maximumf %209, %210 : vector<8x128xf32>
    %c5 = arith.constant 5 : index
    %c0_74 = arith.constant 0 : index
    %212 = vector.load %arg7[%c5, %c0_74] : memref<11x256xf32, #tpu.memory_space<vmem>>, vector<1x64xf32>
    %c6 = arith.constant 6 : index
    %c0_75 = arith.constant 0 : index
    %213 = vector.load %arg7[%c6, %c0_75] : memref<11x256xf32, #tpu.memory_space<vmem>>, vector<1x64xf32>
    %214 = arith.truncf %211 : vector<8x128xf32> to vector<8x128xbf16>
    %c5_i32 = arith.constant 5 : i32
    %215 = arith.addi %2, %c5_i32 : i32
    %216 = tpu.iota {dimensions = array<i32: 0>} : vector<8x128xi32>
    %217 = vector.broadcast %0 : i32 to vector<8x128xi32>
    %218 = arith.addi %216, %217 : vector<8x128xi32>
    %219 = tpu.iota {dimensions = array<i32: 1>} : vector<8x128xi32>
    %c-1640531535_i32_76 = arith.constant -1640531535 : i32
    %220 = vector.broadcast %c-1640531535_i32_76 : i32 to vector<8x128xi32>
    %221 = arith.muli %218, %220 : vector<8x128xi32>
    %c-2048144777_i32_77 = arith.constant -2048144777 : i32
    %222 = vector.broadcast %c-2048144777_i32_77 : i32 to vector<8x128xi32>
    %223 = arith.muli %219, %222 : vector<8x128xi32>
    %224 = arith.xori %221, %223 : vector<8x128xi32>
    %225 = vector.broadcast %215 : i32 to vector<8x128xi32>
    %226 = arith.xori %224, %225 : vector<8x128xi32>
    %c16_i32_78 = arith.constant 16 : i32
    %227 = vector.broadcast %c16_i32_78 : i32 to vector<8x128xi32>
    %228 = arith.shrsi %226, %227 : vector<8x128xi32>
    %c65535_i32_79 = arith.constant 65535 : i32
    %229 = vector.broadcast %c65535_i32_79 : i32 to vector<8x128xi32>
    %230 = arith.andi %228, %229 : vector<8x128xi32>
    %231 = arith.xori %226, %230 : vector<8x128xi32>
    %c2146121005_i32_80 = arith.constant 2146121005 : i32
    %232 = vector.broadcast %c2146121005_i32_80 : i32 to vector<8x128xi32>
    %233 = arith.muli %231, %232 : vector<8x128xi32>
    %c15_i32_81 = arith.constant 15 : i32
    %234 = vector.broadcast %c15_i32_81 : i32 to vector<8x128xi32>
    %235 = arith.shrsi %233, %234 : vector<8x128xi32>
    %c131071_i32_82 = arith.constant 131071 : i32
    %236 = vector.broadcast %c131071_i32_82 : i32 to vector<8x128xi32>
    %237 = arith.andi %235, %236 : vector<8x128xi32>
    %238 = arith.xori %233, %237 : vector<8x128xi32>
    %c-2073254261_i32_83 = arith.constant -2073254261 : i32
    %239 = vector.broadcast %c-2073254261_i32_83 : i32 to vector<8x128xi32>
    %240 = arith.muli %238, %239 : vector<8x128xi32>
    %c16_i32_84 = arith.constant 16 : i32
    %241 = vector.broadcast %c16_i32_84 : i32 to vector<8x128xi32>
    %242 = arith.shrsi %240, %241 : vector<8x128xi32>
    %c65535_i32_85 = arith.constant 65535 : i32
    %243 = vector.broadcast %c65535_i32_85 : i32 to vector<8x128xi32>
    %244 = arith.andi %242, %243 : vector<8x128xi32>
    %245 = arith.xori %240, %244 : vector<8x128xi32>
    %c1_i32_86 = arith.constant 1 : i32
    %246 = vector.broadcast %c1_i32_86 : i32 to vector<8x128xi32>
    %247 = arith.andi %245, %246 : vector<8x128xi32>
    %c0_i32_87 = arith.constant 0 : i32
    %248 = vector.broadcast %c0_i32_87 : i32 to vector<8x128xi32>
    %249 = arith.cmpi eq, %247, %248 : vector<8x128xi32>
    %cst_88 = arith.constant 1.000000e+00 : f32
    %cst_89 = arith.constant -1.000000e+00 : f32
    %250 = vector.broadcast %cst_88 : f32 to vector<8x128xf32>
    %251 = vector.broadcast %cst_89 : f32 to vector<8x128xf32>
    %252 = arith.select %249, %250, %251 : vector<8x128xi1>, vector<8x128xf32>
    %253 = arith.truncf %252 : vector<8x128xf32> to vector<8x128xbf16>
    %c6_i32 = arith.constant 6 : i32
    %254 = arith.addi %2, %c6_i32 : i32
    %255 = tpu.iota {dimensions = array<i32: 0>} : vector<8x64xi32>
    %256 = vector.broadcast %0 : i32 to vector<8x64xi32>
    %257 = arith.addi %255, %256 : vector<8x64xi32>
    %258 = tpu.iota {dimensions = array<i32: 1>} : vector<8x64xi32>
    %c-1640531535_i32_90 = arith.constant -1640531535 : i32
    %259 = vector.broadcast %c-1640531535_i32_90 : i32 to vector<8x64xi32>
    %260 = arith.muli %257, %259 : vector<8x64xi32>
    %c-2048144777_i32_91 = arith.constant -2048144777 : i32
    %261 = vector.broadcast %c-2048144777_i32_91 : i32 to vector<8x64xi32>
    %262 = arith.muli %258, %261 : vector<8x64xi32>
    %263 = arith.xori %260, %262 : vector<8x64xi32>
    %264 = vector.broadcast %254 : i32 to vector<8x64xi32>
    %265 = arith.xori %263, %264 : vector<8x64xi32>
    %c16_i32_92 = arith.constant 16 : i32
    %266 = vector.broadcast %c16_i32_92 : i32 to vector<8x64xi32>
    %267 = arith.shrsi %265, %266 : vector<8x64xi32>
    %c65535_i32_93 = arith.constant 65535 : i32
    %268 = vector.broadcast %c65535_i32_93 : i32 to vector<8x64xi32>
    %269 = arith.andi %267, %268 : vector<8x64xi32>
    %270 = arith.xori %265, %269 : vector<8x64xi32>
    %c2146121005_i32_94 = arith.constant 2146121005 : i32
    %271 = vector.broadcast %c2146121005_i32_94 : i32 to vector<8x64xi32>
    %272 = arith.muli %270, %271 : vector<8x64xi32>
    %c15_i32_95 = arith.constant 15 : i32
    %273 = vector.broadcast %c15_i32_95 : i32 to vector<8x64xi32>
    %274 = arith.shrsi %272, %273 : vector<8x64xi32>
    %c131071_i32_96 = arith.constant 131071 : i32
    %275 = vector.broadcast %c131071_i32_96 : i32 to vector<8x64xi32>
    %276 = arith.andi %274, %275 : vector<8x64xi32>
    %277 = arith.xori %272, %276 : vector<8x64xi32>
    %c-2073254261_i32_97 = arith.constant -2073254261 : i32
    %278 = vector.broadcast %c-2073254261_i32_97 : i32 to vector<8x64xi32>
    %279 = arith.muli %277, %278 : vector<8x64xi32>
    %c16_i32_98 = arith.constant 16 : i32
    %280 = vector.broadcast %c16_i32_98 : i32 to vector<8x64xi32>
    %281 = arith.shrsi %279, %280 : vector<8x64xi32>
    %c65535_i32_99 = arith.constant 65535 : i32
    %282 = vector.broadcast %c65535_i32_99 : i32 to vector<8x64xi32>
    %283 = arith.andi %281, %282 : vector<8x64xi32>
    %284 = arith.xori %279, %283 : vector<8x64xi32>
    %c1_i32_100 = arith.constant 1 : i32
    %285 = vector.broadcast %c1_i32_100 : i32 to vector<8x64xi32>
    %286 = arith.andi %284, %285 : vector<8x64xi32>
    %c0_i32_101 = arith.constant 0 : i32
    %287 = vector.broadcast %c0_i32_101 : i32 to vector<8x64xi32>
    %288 = arith.cmpi eq, %286, %287 : vector<8x64xi32>
    %cst_102 = arith.constant 1.000000e+00 : f32
    %cst_103 = arith.constant -1.000000e+00 : f32
    %289 = vector.broadcast %cst_102 : f32 to vector<8x64xf32>
    %290 = vector.broadcast %cst_103 : f32 to vector<8x64xf32>
    %291 = arith.select %288, %289, %290 : vector<8x64xi1>, vector<8x64xf32>
    %c0_104 = arith.constant 0 : index
    %c0_105 = arith.constant 0 : index
    %292 = vector.load %arg6[%c0_104, %c0_105] : memref<256x64xbf16, #tpu.memory_space<vmem>>, vector<128x64xbf16>
    %cst_106 = arith.constant dense<0.000000e+00> : vector<8x64xf32>
    %293 = tpu.matmul %214, %292, %cst_106 {dimension_numbers = #tpu.dot_dimension_numbers<[1], [0], [0], [1], [0, 0, 1, 1], [], []>} : vector<8x128xbf16>, vector<128x64xbf16>, vector<8x64xf32> -> vector<8x64xf32>
    %294 = vector.broadcast %212 : vector<1x64xf32> to vector<8x64xf32>
    %295 = arith.addf %293, %294 : vector<8x64xf32>
    %296 = arith.mulf %214, %253 : vector<8x128xbf16>
    %c128_107 = arith.constant 128 : index
    %c0_108 = arith.constant 0 : index
    %297 = vector.load %arg6[%c128_107, %c0_108] : memref<256x64xbf16, #tpu.memory_space<vmem>>, vector<128x64xbf16>
    %cst_109 = arith.constant dense<0.000000e+00> : vector<8x64xf32>
    %298 = tpu.matmul %296, %297, %cst_109 {dimension_numbers = #tpu.dot_dimension_numbers<[1], [0], [0], [1], [0, 0, 1, 1], [], []>} : vector<8x128xbf16>, vector<128x64xbf16>, vector<8x64xf32> -> vector<8x64xf32>
    %299 = vector.broadcast %213 : vector<1x64xf32> to vector<8x64xf32>
    %300 = arith.addf %298, %299 : vector<8x64xf32>
    %301 = arith.mulf %300, %291 : vector<8x64xf32>
    %302 = arith.addf %295, %301 : vector<8x64xf32>
    %cst_110 = arith.constant 0.000000e+00 : f32
    %303 = vector.broadcast %cst_110 : f32 to vector<8x64xf32>
    %304 = arith.maximumf %302, %303 : vector<8x64xf32>
    %c7 = arith.constant 7 : index
    %c0_111 = arith.constant 0 : index
    %305 = vector.load %arg7[%c7, %c0_111] : memref<11x256xf32, #tpu.memory_space<vmem>>, vector<1x64xf32>
    %c8 = arith.constant 8 : index
    %c0_112 = arith.constant 0 : index
    %306 = vector.load %arg7[%c8, %c0_112] : memref<11x256xf32, #tpu.memory_space<vmem>>, vector<1x64xf32>
    %c9 = arith.constant 9 : index
    %c0_113 = arith.constant 0 : index
    %307 = vector.load %arg7[%c9, %c0_113] : memref<11x256xf32, #tpu.memory_space<vmem>>, vector<1x1xf32>
    %c10 = arith.constant 10 : index
    %c0_114 = arith.constant 0 : index
    %308 = vector.load %arg7[%c10, %c0_114] : memref<11x256xf32, #tpu.memory_space<vmem>>, vector<1x1xf32>
    %c7_i32 = arith.constant 7 : i32
    %309 = arith.addi %2, %c7_i32 : i32
    %310 = tpu.iota {dimensions = array<i32: 0>} : vector<8x64xi32>
    %311 = vector.broadcast %0 : i32 to vector<8x64xi32>
    %312 = arith.addi %310, %311 : vector<8x64xi32>
    %313 = tpu.iota {dimensions = array<i32: 1>} : vector<8x64xi32>
    %c-1640531535_i32_115 = arith.constant -1640531535 : i32
    %314 = vector.broadcast %c-1640531535_i32_115 : i32 to vector<8x64xi32>
    %315 = arith.muli %312, %314 : vector<8x64xi32>
    %c-2048144777_i32_116 = arith.constant -2048144777 : i32
    %316 = vector.broadcast %c-2048144777_i32_116 : i32 to vector<8x64xi32>
    %317 = arith.muli %313, %316 : vector<8x64xi32>
    %318 = arith.xori %315, %317 : vector<8x64xi32>
    %319 = vector.broadcast %309 : i32 to vector<8x64xi32>
    %320 = arith.xori %318, %319 : vector<8x64xi32>
    %c16_i32_117 = arith.constant 16 : i32
    %321 = vector.broadcast %c16_i32_117 : i32 to vector<8x64xi32>
    %322 = arith.shrsi %320, %321 : vector<8x64xi32>
    %c65535_i32_118 = arith.constant 65535 : i32
    %323 = vector.broadcast %c65535_i32_118 : i32 to vector<8x64xi32>
    %324 = arith.andi %322, %323 : vector<8x64xi32>
    %325 = arith.xori %320, %324 : vector<8x64xi32>
    %c2146121005_i32_119 = arith.constant 2146121005 : i32
    %326 = vector.broadcast %c2146121005_i32_119 : i32 to vector<8x64xi32>
    %327 = arith.muli %325, %326 : vector<8x64xi32>
    %c15_i32_120 = arith.constant 15 : i32
    %328 = vector.broadcast %c15_i32_120 : i32 to vector<8x64xi32>
    %329 = arith.shrsi %327, %328 : vector<8x64xi32>
    %c131071_i32_121 = arith.constant 131071 : i32
    %330 = vector.broadcast %c131071_i32_121 : i32 to vector<8x64xi32>
    %331 = arith.andi %329, %330 : vector<8x64xi32>
    %332 = arith.xori %327, %331 : vector<8x64xi32>
    %c-2073254261_i32_122 = arith.constant -2073254261 : i32
    %333 = vector.broadcast %c-2073254261_i32_122 : i32 to vector<8x64xi32>
    %334 = arith.muli %332, %333 : vector<8x64xi32>
    %c16_i32_123 = arith.constant 16 : i32
    %335 = vector.broadcast %c16_i32_123 : i32 to vector<8x64xi32>
    %336 = arith.shrsi %334, %335 : vector<8x64xi32>
    %c65535_i32_124 = arith.constant 65535 : i32
    %337 = vector.broadcast %c65535_i32_124 : i32 to vector<8x64xi32>
    %338 = arith.andi %336, %337 : vector<8x64xi32>
    %339 = arith.xori %334, %338 : vector<8x64xi32>
    %c1_i32_125 = arith.constant 1 : i32
    %340 = vector.broadcast %c1_i32_125 : i32 to vector<8x64xi32>
    %341 = arith.andi %339, %340 : vector<8x64xi32>
    %c0_i32_126 = arith.constant 0 : i32
    %342 = vector.broadcast %c0_i32_126 : i32 to vector<8x64xi32>
    %343 = arith.cmpi eq, %341, %342 : vector<8x64xi32>
    %cst_127 = arith.constant 1.000000e+00 : f32
    %cst_128 = arith.constant -1.000000e+00 : f32
    %344 = vector.broadcast %cst_127 : f32 to vector<8x64xf32>
    %345 = vector.broadcast %cst_128 : f32 to vector<8x64xf32>
    %346 = arith.select %343, %344, %345 : vector<8x64xi1>, vector<8x64xf32>
    %c8_i32_129 = arith.constant 8 : i32
    %347 = arith.addi %2, %c8_i32_129 : i32
    %348 = tpu.iota {dimensions = array<i32: 0>} : vector<8x1xi32>
    %349 = vector.broadcast %0 : i32 to vector<8x1xi32>
    %350 = arith.addi %348, %349 : vector<8x1xi32>
    %351 = tpu.iota {dimensions = array<i32: 1>} : vector<8x1xi32>
    %c-1640531535_i32_130 = arith.constant -1640531535 : i32
    %352 = vector.broadcast %c-1640531535_i32_130 : i32 to vector<8x1xi32>
    %353 = arith.muli %350, %352 : vector<8x1xi32>
    %c-2048144777_i32_131 = arith.constant -2048144777 : i32
    %354 = vector.broadcast %c-2048144777_i32_131 : i32 to vector<8x1xi32>
    %355 = arith.muli %351, %354 : vector<8x1xi32>
    %356 = arith.xori %353, %355 : vector<8x1xi32>
    %357 = vector.broadcast %347 : i32 to vector<8x1xi32>
    %358 = arith.xori %356, %357 : vector<8x1xi32>
    %c16_i32_132 = arith.constant 16 : i32
    %359 = vector.broadcast %c16_i32_132 : i32 to vector<8x1xi32>
    %360 = arith.shrsi %358, %359 : vector<8x1xi32>
    %c65535_i32_133 = arith.constant 65535 : i32
    %361 = vector.broadcast %c65535_i32_133 : i32 to vector<8x1xi32>
    %362 = arith.andi %360, %361 : vector<8x1xi32>
    %363 = arith.xori %358, %362 : vector<8x1xi32>
    %c2146121005_i32_134 = arith.constant 2146121005 : i32
    %364 = vector.broadcast %c2146121005_i32_134 : i32 to vector<8x1xi32>
    %365 = arith.muli %363, %364 : vector<8x1xi32>
    %c15_i32_135 = arith.constant 15 : i32
    %366 = vector.broadcast %c15_i32_135 : i32 to vector<8x1xi32>
    %367 = arith.shrsi %365, %366 : vector<8x1xi32>
    %c131071_i32_136 = arith.constant 131071 : i32
    %368 = vector.broadcast %c131071_i32_136 : i32 to vector<8x1xi32>
    %369 = arith.andi %367, %368 : vector<8x1xi32>
    %370 = arith.xori %365, %369 : vector<8x1xi32>
    %c-2073254261_i32_137 = arith.constant -2073254261 : i32
    %371 = vector.broadcast %c-2073254261_i32_137 : i32 to vector<8x1xi32>
    %372 = arith.muli %370, %371 : vector<8x1xi32>
    %c16_i32_138 = arith.constant 16 : i32
    %373 = vector.broadcast %c16_i32_138 : i32 to vector<8x1xi32>
    %374 = arith.shrsi %372, %373 : vector<8x1xi32>
    %c65535_i32_139 = arith.constant 65535 : i32
    %375 = vector.broadcast %c65535_i32_139 : i32 to vector<8x1xi32>
    %376 = arith.andi %374, %375 : vector<8x1xi32>
    %377 = arith.xori %372, %376 : vector<8x1xi32>
    %c1_i32_140 = arith.constant 1 : i32
    %378 = vector.broadcast %c1_i32_140 : i32 to vector<8x1xi32>
    %379 = arith.andi %377, %378 : vector<8x1xi32>
    %c0_i32_141 = arith.constant 0 : i32
    %380 = vector.broadcast %c0_i32_141 : i32 to vector<8x1xi32>
    %381 = arith.cmpi eq, %379, %380 : vector<8x1xi32>
    %cst_142 = arith.constant 1.000000e+00 : f32
    %cst_143 = arith.constant -1.000000e+00 : f32
    %382 = vector.broadcast %cst_142 : f32 to vector<8x1xf32>
    %383 = vector.broadcast %cst_143 : f32 to vector<8x1xf32>
    %384 = arith.select %381, %382, %383 : vector<8x1xi1>, vector<8x1xf32>
    %385 = vector.broadcast %384 : vector<8x1xf32> to vector<8x64xf32>
    %386 = arith.mulf %346, %385 : vector<8x64xf32>
    %387 = vector.broadcast %306 : vector<1x64xf32> to vector<8x64xf32>
    %388 = arith.mulf %386, %387 : vector<8x64xf32>
    %389 = vector.broadcast %305 : vector<1x64xf32> to vector<8x64xf32>
    %390 = arith.addf %389, %388 : vector<8x64xf32>
    %391 = arith.mulf %304, %390 : vector<8x64xf32>
    %cst_144 = arith.constant dense<0.000000e+00> : vector<8xf32>
    %392 = vector.multi_reduction <add>, %391, %cst_144 [1] : vector<8x64xf32> to vector<8xf32>
    %393 = vector.shape_cast %392 : vector<8xf32> to vector<8x1xf32>
    %394 = vector.broadcast %307 : vector<1x1xf32> to vector<8x1xf32>
    %395 = arith.addf %393, %394 : vector<8x1xf32>
    %396 = vector.broadcast %308 : vector<1x1xf32> to vector<8x1xf32>
    %397 = arith.mulf %396, %384 : vector<8x1xf32>
    %398 = arith.addf %395, %397 : vector<8x1xf32>
    %c0_145 = arith.constant 0 : index
    %c0_146 = arith.constant 0 : index
    %399 = vector.load %arg8[%c0_145, %c0_146] : memref<8x1xf32, #tpu.memory_space<vmem>>, vector<8x1xf32>
    tpu.vector_store %arg8[%c0_145, %c0_146], %398 {strides = array<i32>} : memref<8x1xf32, #tpu.memory_space<vmem>>, vector<8x1xf32>,
    return
  }
  func.func @transform_0(%arg0: i32, %arg1: memref<1xi32, #tpu.memory_space<smem>>) -> (i32, i32) {
    %c0_i32 = arith.constant 0 : i32
    %c0_i32_0 = arith.constant 0 : i32
    return %arg0, %c0_i32 : i32, i32
  }
  func.func @transform_1(%arg0: i32, %arg1: memref<1xi32, #tpu.memory_space<smem>>) -> (i32, i32) {
    %c0_i32 = arith.constant 0 : i32
    %c0_i32_0 = arith.constant 0 : i32
    %c0_i32_1 = arith.constant 0 : i32
    return %c0_i32, %c0_i32_0 : i32, i32
  }
  func.func @transform_2(%arg0: i32, %arg1: memref<1xi32, #tpu.memory_space<smem>>) -> (i32, i32) {
    %c0_i32 = arith.constant 0 : i32
    %c0_i32_0 = arith.constant 0 : i32
    %c0_i32_1 = arith.constant 0 : i32
    return %c0_i32, %c0_i32_0 : i32, i32
  }
  func.func @transform_3(%arg0: i32, %arg1: memref<1xi32, #tpu.memory_space<smem>>) -> (i32, i32) {
    %c0_i32 = arith.constant 0 : i32
    %c0_i32_0 = arith.constant 0 : i32
    %c0_i32_1 = arith.constant 0 : i32
    return %c0_i32, %c0_i32_0 : i32, i32
  }
  func.func @transform_4(%arg0: i32, %arg1: memref<1xi32, #tpu.memory_space<smem>>) -> (i32, i32) {
    %c0_i32 = arith.constant 0 : i32
    %c0_i32_0 = arith.constant 0 : i32
    %c0_i32_1 = arith.constant 0 : i32
    return %c0_i32, %c0_i32_0 : i32, i32
  }
  func.func @transform_5(%arg0: i32, %arg1: memref<1xi32, #tpu.memory_space<smem>>) -> (i32, i32) {
    %c0_i32 = arith.constant 0 : i32
    %c0_i32_0 = arith.constant 0 : i32
    %c0_i32_1 = arith.constant 0 : i32
    return %c0_i32, %c0_i32_0 : i32, i32
  }
  func.func @transform_6(%arg0: i32, %arg1: memref<1xi32, #tpu.memory_space<smem>>) -> (i32, i32) {
    %c0_i32 = arith.constant 0 : i32
    %c0_i32_0 = arith.constant 0 : i32
    return %arg0, %c0_i32 : i32, i32
  }
}

</mosaic_0001>

<llo_original>
// kernel: tpu_custom_call.1
$region0: #{tpu_custom_call.1}
  #allocation0 [shape = 'u32[]', space=smem, size = 0x4, offset = 0x4, fixed_abs, tag = 'smem constant byte address 0x4 - core index']
  #allocation1 [shape = 'u32[72,128]{1,0:T(1,128)}', space=vmem, size = 0x9000, scoped, tag = 'internal scratch']
  #allocation2 [shape = 's32[1]{0}', space=sflag, size = 0x4, scoped, tag = 'scoped memory for tpu_custom_call.1']
  #allocation3 [shape = 's32[1]{0:T(128)S(6)}', space=smem, size = 0x200, scoped, tag = 'prefetched SMEM operand 0']
  %s0 = inlined_call_operand.<no memory space> [shape: s32[1], index: 0, kind: input, shape index: {}]
  %s1 = inlined_call_operand.vmem [shape: f32[8,3], index: 1, kind: input, shape index: {}]
  %s2 = inlined_call_operand.vmem [shape: f32[6,128], index: 2, kind: input, shape index: {}]
  %s3 = inlined_call_operand.hbm [shape: bf16[256,256], index: 3, kind: input, shape index: {}]
  %s4 = inlined_call_operand.hbm [shape: bf16[512,128], index: 4, kind: input, shape index: {}]
  %s5 = inlined_call_operand.vmem [shape: bf16[256,64], index: 5, kind: input, shape index: {}]
  %s6 = inlined_call_operand.vmem [shape: f32[11,256], index: 6, kind: input, shape index: {}]
  %s7 = inlined_call_operand.vmem [shape: f32[8,1], index: 7, kind: output, shape index: {}]
  %s8 = sld [smem:[#allocation0]]
  $region42: #{tpu_custom_call.1} parent=0
    _
  %s10 = ssub.s32 1, %s8
  %s11 = scalar_select 0, %s10, %s8
  %12 = sst [smem:[#allocation3]] %s0
  $region1: #{tpu_custom_call.1} parent=0
    #allocation4 [shape = 'u8[131072]{0}', space=vmem, size = 0x20000, scoped, tag = 'input window, operand 3, single buffered']
    #allocation5 [shape = 's32[1]{0}', space=sflag, size = 0x4, scoped, tag = 'scoped memory for tpu_custom_call.1']
    #allocation6 [shape = 'u8[131072]{0}', space=vmem, size = 0x20000, scoped, tag = 'input window, operand 4, single buffered']
    #allocation7 [shape = 's32[1]{0}', space=sflag, size = 0x4, scoped, tag = 'scoped memory for tpu_custom_call.1']
    %13 = vsyncpa [#allocation5], 0
    %14 = vsyncpa [#allocation7], 0
    // Predicated region
    $region2: #{tpu_custom_call.1} parent=1 // pred_check
      _
    $region3: #{tpu_custom_call.1} parent=1 // pred_check_branch
      %16 = sbr.rel (0) target = $region5
    $region4: #{tpu_custom_call.1} parent=1 // pred_region
      _
    $region5: #{tpu_custom_call.1} parent=1 // pred_fallthru
      _
    // Predicated region
    $region6: #{tpu_custom_call.1} parent=1 // pred_check
      _
    $region7: #{tpu_custom_call.1} parent=1 // pred_check_branch
      %18 = sbr.rel (0) target = $region9
    $region8: #{tpu_custom_call.1} parent=1 // pred_region
      _
    $region9: #{tpu_custom_call.1} parent=1 // pred_fallthru
      _
    // Predicated region
    $region10: #{tpu_custom_call.1} parent=1 // pred_check
      _
    $region11: #{tpu_custom_call.1} parent=1 // pred_check_branch
      %20 = sbr.rel (0) target = $region13
    $region12: #{tpu_custom_call.1} parent=1 // pred_region
      %22 = vsyncadd [#allocation5], 0
      %s23 = sshll.u32 %s3, 4
      %s24 = int_to_ptr.hbm [resolvable:$true] %s23
      %s25 = sshll.u32 [#allocation4], 4
      %s26 = int_to_ptr.vmem [resolvable:$true] %s25
      %31 = dma.hbm_to_vmem [thread:$0]  %s24, 4096, %s26, [#allocation5], 128, 128, 8
    $region13: #{tpu_custom_call.1} parent=1 // pred_fallthru
      _
    // Predicated region
    $region14: #{tpu_custom_call.1} parent=1 // pred_check
      _
    $region15: #{tpu_custom_call.1} parent=1 // pred_check_branch
      %33 = sbr.rel (0) target = $region17
    $region16: #{tpu_custom_call.1} parent=1 // pred_region
      %35 = vsyncadd [#allocation7], 0
      %s36 = sshll.u32 %s4, 4
      %s37 = int_to_ptr.hbm [resolvable:$true] %s36
      %s38 = sshll.u32 [#allocation6], 4
      %s39 = int_to_ptr.vmem [resolvable:$true] %s38
      %44 = dma.hbm_to_vmem [thread:$0]  %s37, 4096, %s39, [#allocation7], 64, 64, 4
    $region17: #{tpu_custom_call.1} parent=1 // pred_fallthru
      _
    // Predicated region
    $region18: #{tpu_custom_call.1} parent=1 // pred_check
      _
    $region19: #{tpu_custom_call.1} parent=1 // pred_check_branch
      %46 = sbr.rel (0) target = $region21
    $region20: #{tpu_custom_call.1} parent=1 // pred_region
      _
    $region21: #{tpu_custom_call.1} parent=1 // pred_fallthru
      _
    // Predicated region
    $region22: #{tpu_custom_call.1} parent=1 // pred_check
      _
    $region23: #{tpu_custom_call.1} parent=1 // pred_check_branch
      %48 = sbr.rel (0) target = $region25
    $region24: #{tpu_custom_call.1} parent=1 // pred_region
      _
    $region25: #{tpu_custom_call.1} parent=1 // pred_fallthru
      _
    // Predicated region
    $region26: #{tpu_custom_call.1} parent=1 // pred_check
      _
    $region27: #{tpu_custom_call.1} parent=1 // pred_check_branch
      %50 = sbr.rel (0) target = $region29
    $region28: #{tpu_custom_call.1} parent=1 // pred_region
      %52 = dma.done [#allocation5], 4096
    $region29: #{tpu_custom_call.1} parent=1 // pred_fallthru
      _
    // Predicated region
    $region30: #{tpu_custom_call.1} parent=1 // pred_check
      _
    $region31: #{tpu_custom_call.1} parent=1 // pred_check_branch
      %54 = sbr.rel (0) target = $region33
    $region32: #{tpu_custom_call.1} parent=1 // pred_region
      %56 = dma.done [#allocation7], 4096
    $region33: #{tpu_custom_call.1} parent=1 // pred_fallthru
      _
    %s57 = smul.u32 0, 8
    %s58 = sld [smem:[#allocation3]]
    %s59 = smul.u32 %s58, 16777619
    %v60 = vld [vmem:[%s2] sm:$0x7]
    %v61 = vld [vmem:[%s2 + $0x3] sm:$0x7]
    %v62 = vmul.f32 %v60, %v61
    %v63 = vld [vmem:[%s1] sm:$0xff]
    %65 = vset.pattern.permute.xlu0 0
    %66 = vperm.xlu0 %65, %v63
    %v67 = vpop.permute.xlu0 %66
    %v69 = vperm.slane %v62, 0
    %v70 = vmul.f32 %v67, %v69
    %71 = vset.pattern.permute.xlu0 1
    %72 = vperm.xlu0 %71, %v63
    %v73 = vpop.permute.xlu0 %72
    %v75 = vperm.slane %v62, 1
    %v76 = vmul.f32 %v73, %v75
    %v77 = vadd.f32 %v70, %v76
    %78 = vset.pattern.permute.xlu0 2
    %79 = vperm.xlu0 %78, %v63
    %v80 = vpop.permute.xlu0 %79
    %v82 = vperm.slane %v62, 2
    %v83 = vmul.f32 %v80, %v82
    %v84 = vadd.f32 %v77, %v83
    %v85 = vld [vmem:[%s6] ss:$0 sm:$0xff]
    %v86 = vadd.f32 %v84, %v85
    %s87 = scalar_lea.vmem %s6, 1
    %v88 = vld [vmem:[%s87] ss:$8 sm:$0x3]
    %s89 = scalar_lea.vmem %s6, 2
    %v90 = vld [vmem:[%s89] ss:$8 sm:$0x3]
    %v91 = vpack.c.bf16 %v86, %v86
    %s92 = sadd.s32 %s59, 1
    %v93 = vlaneseq
    %v94 = vshrl.u32 %v93, 7
    %v95 = vstv %s57
    %v96 = vadd.s32 %v94, %v95
    %v97 = vlaneseq
    %v98 = vand.u32 %v97, 127
    %v99 = vmul.u32 %v96, 2654435761
    %v100 = vmul.u32 %v98, 2246822519
    %v101 = vxor.u32 %v99, %v100
    %v102 = vstv %s92
    %v103 = vxor.u32 %v101, %v102
    %v104 = vshra.s32 %v103, 16
    %v105 = vand.u32 %v104, 65535
    %v106 = vxor.u32 %v103, %v105
    %v107 = vmul.u32 %v106, 2146121005
    %v108 = vshra.s32 %v107, 15
    %v109 = vand.u32 %v108, 131071
    %v110 = vxor.u32 %v107, %v109
    %v111 = vmul.u32 %v110, 2221713035
    %v112 = vshra.s32 %v111, 16
    %v113 = vand.u32 %v112, 65535
    %v114 = vxor.u32 %v111, %v113
    %v115 = vand.u32 %v114, 1
    %vm116 = vcmp.eq.s32.totalorder %v115, 0
    %v117 = vsel %vm116, 1.0, -1.0
    %v118 = vpack.c.bf16 %v117, %v117
    %s119 = sadd.s32 %s59, 2
    %v120 = vadd.s32 %v98, 128
    %v121 = vmul.u32 %v120, 2246822519
    %v122 = vxor.u32 %v99, %v121
    %v123 = vstv %s119
    %v124 = vxor.u32 %v101, %v123
    %v125 = vxor.u32 %v122, %v123
    %v126 = vshra.s32 %v124, 16
    %v127 = vshra.s32 %v125, 16
    %v128 = vand.u32 %v126, 65535
    %v129 = vand.u32 %v127, 65535
    %v130 = vxor.u32 %v124, %v128
    %v131 = vxor.u32 %v125, %v129
    %v132 = vmul.u32 %v130, 2146121005
    %v133 = vmul.u32 %v131, 2146121005
    %v134 = vshra.s32 %v132, 15
    %v135 = vshra.s32 %v133, 15
    %v136 = vand.u32 %v134, 131071
    %v137 = vand.u32 %v135, 131071
    %v138 = vxor.u32 %v132, %v136
    %v139 = vxor.u32 %v133, %v137
    %v140 = vmul.u32 %v138, 2221713035
    %v141 = vmul.u32 %v139, 2221713035
    %v142 = vshra.s32 %v140, 16
    %v143 = vshra.s32 %v141, 16
    %v144 = vand.u32 %v142, 65535
    %v145 = vand.u32 %v143, 65535
    %v146 = vxor.u32 %v140, %v144
    %v147 = vxor.u32 %v141, %v145
    %v148 = vand.u32 %v146, 1
    %v149 = vand.u32 %v147, 1
    %vm150 = vcmp.eq.s32.totalorder %v148, 0
    %vm151 = vcmp.eq.s32.totalorder %v149, 0
    %v152 = vsel %vm150, 1.0, -1.0
    %v153 = vsel %vm151, 1.0, -1.0
    %v154 = vld [vmem:[#allocation4] sm:$0xff]
    %v155 = vld [vmem:[#allocation4 + $0x8] sm:$0xff]
    %v156 = vld [vmem:[#allocation4 + $0x10] sm:$0xff]
    %v157 = vld [vmem:[#allocation4 + $0x18] sm:$0xff]
    %v158 = vld [vmem:[#allocation4 + $0x20] sm:$0xff]
    %v159 = vld [vmem:[#allocation4 + $0x28] sm:$0xff]
    %v160 = vld [vmem:[#allocation4 + $0x30] sm:$0xff]
    %v161 = vld [vmem:[#allocation4 + $0x38] sm:$0xff]
    %v162 = vld [vmem:[#allocation4 + $0x40] sm:$0xff]
    %v163 = vld [vmem:[#allocation4 + $0x48] sm:$0xff]
    %v164 = vld [vmem:[#allocation4 + $0x50] sm:$0xff]
    %v165 = vld [vmem:[#allocation4 + $0x58] sm:$0xff]
    %v166 = vld [vmem:[#allocation4 + $0x60] sm:$0xff]
    %v167 = vld [vmem:[#allocation4 + $0x68] sm:$0xff]
    %v168 = vld [vmem:[#allocation4 + $0x70] sm:$0xff]
    %v169 = vld [vmem:[#allocation4 + $0x78] sm:$0xff]
    %v171 = vperm.slane %v88, 0
    %v172 = vperm.slane %v88, 1
    %v191 = vunpack.c.l.b16 %v154
    %v192 = vunpack.c.h.b16 %v154
    %v193 = vunpack.c.l.b16 %v155
    %v194 = vunpack.c.h.b16 %v155
    %v195 = vunpack.c.l.b16 %v156
    %v196 = vunpack.c.h.b16 %v156
    %v197 = vunpack.c.l.b16 %v157
    %v198 = vunpack.c.h.b16 %v157
    %v199 = vunpack.c.l.b16 %v158
    %v200 = vunpack.c.h.b16 %v158
    %v201 = vunpack.c.l.b16 %v159
    %v202 = vunpack.c.h.b16 %v159
    %v203 = vunpack.c.l.b16 %v160
    %v204 = vunpack.c.h.b16 %v160
    %v205 = vunpack.c.l.b16 %v161
    %v206 = vunpack.c.h.b16 %v161
    %v207 = vunpack.c.l.b16 %v162
    %v208 = vunpack.c.h.b16 %v162
    %v209 = vunpack.c.l.b16 %v163
    %v210 = vunpack.c.h.b16 %v163
    %v211 = vunpack.c.l.b16 %v164
    %v212 = vunpack.c.h.b16 %v164
    %v213 = vunpack.c.l.b16 %v165
    %v214 = vunpack.c.h.b16 %v165
    %v215 = vunpack.c.l.b16 %v166
    %v216 = vunpack.c.h.b16 %v166
    %v217 = vunpack.c.l.b16 %v167
    %v218 = vunpack.c.h.b16 %v167
    %v219 = vunpack.c.l.b16 %v168
    %v220 = vunpack.c.h.b16 %v168
    %v221 = vunpack.c.l.b16 %v169
    %v222 = vunpack.c.h.b16 %v169
    %v223 = vpack.c.b16 %v193, %v191
    %v224 = vpack.c.b16 %v194, %v192
    %v225 = vpack.c.b16 %v197, %v195
    %v226 = vpack.c.b16 %v198, %v196
    %v227 = vpack.c.b16 %v201, %v199
    %v228 = vpack.c.b16 %v202, %v200
    %v229 = vpack.c.b16 %v205, %v203
    %v230 = vpack.c.b16 %v206, %v204
    %v231 = vpack.c.b16 %v209, %v207
    %v232 = vpack.c.b16 %v210, %v208
    %v233 = vpack.c.b16 %v213, %v211
    %v234 = vpack.c.b16 %v214, %v212
    %v235 = vpack.c.b16 %v217, %v215
    %v236 = vpack.c.b16 %v218, %v216
    %v237 = vpack.c.b16 %v221, %v219
    %v238 = vpack.c.b16 %v222, %v220
    %255 = vmatpush.bf16.msra.mxu0 %v237
    %256 = vmatpush.bf16.msra.mxu0 %v235
    %257 = vmatpush.bf16.msra.mxu0 %v233
    %258 = vmatpush.bf16.msra.mxu0 %v231
    %259 = vmatpush.bf16.msra.mxu0 %v229
    %260 = vmatpush.bf16.msra.mxu0 %v227
    %261 = vmatpush.bf16.msra.mxu0 %v225
    %262 = vmatpush.bf16.msra.mxu0 %v223
    %263 = vmatmul.bf16.gmra.mxu0 %v91
    %v264 = vpop.f32.mrf.mxu0
    %v265 = vadd.f32 %v171, %v264
    %v266 = vpop.f32.mrf.mxu0
    %267 = vdwg.mxu0
    %268 = vmatpush.bf16.msra.mxu0 %v238
    %269 = vmatpush.bf16.msra.mxu0 %v236
    %270 = vmatpush.bf16.msra.mxu0 %v234
    %271 = vmatpush.bf16.msra.mxu0 %v232
    %272 = vmatpush.bf16.msra.mxu0 %v230
    %273 = vmatpush.bf16.msra.mxu0 %v228
    %274 = vmatpush.bf16.msra.mxu0 %v226
    %275 = vmatpush.bf16.msra.mxu0 %v224
    %276 = vmatmul.bf16.gmra.mxu0 %v91
    %v277 = vpop.f32.mrf.mxu0
    %v278 = vadd.f32 %v172, %v277
    %v279 = vpop.f32.mrf.mxu0
    %280 = vdwg.mxu0
    %v281 = vunpack.c.l.bf16 %v91
    %v282 = vunpack.c.l.bf16 %v118
    %v283 = vmul.f32 %v281, %v282
    %v284 = vpack.c.bf16 %v283, %v283
    %v285 = vld [vmem:[#allocation4 + $0x80] sm:$0xff]
    %v286 = vld [vmem:[#allocation4 + $0x88] sm:$0xff]
    %v287 = vld [vmem:[#allocation4 + $0x90] sm:$0xff]
    %v288 = vld [vmem:[#allocation4 + $0x98] sm:$0xff]
    %v289 = vld [vmem:[#allocation4 + $0xa0] sm:$0xff]
    %v290 = vld [vmem:[#allocation4 + $0xa8] sm:$0xff]
    %v291 = vld [vmem:[#allocation4 + $0xb0] sm:$0xff]
    %v292 = vld [vmem:[#allocation4 + $0xb8] sm:$0xff]
    %v293 = vld [vmem:[#allocation4 + $0xc0] sm:$0xff]
    %v294 = vld [vmem:[#allocation4 + $0xc8] sm:$0xff]
    %v295 = vld [vmem:[#allocation4 + $0xd0] sm:$0xff]
    %v296 = vld [vmem:[#allocation4 + $0xd8] sm:$0xff]
    %v297 = vld [vmem:[#allocation4 + $0xe0] sm:$0xff]
    %v298 = vld [vmem:[#allocation4 + $0xe8] sm:$0xff]
    %v299 = vld [vmem:[#allocation4 + $0xf0] sm:$0xff]
    %v300 = vld [vmem:[#allocation4 + $0xf8] sm:$0xff]
    %v302 = vperm.slane %v90, 0
    %v303 = vperm.slane %v90, 1
    %v322 = vunpack.c.l.b16 %v285
    %v323 = vunpack.c.h.b16 %v285
    %v324 = vunpack.c.l.b16 %v286
    %v325 = vunpack.c.h.b16 %v286
    %v326 = vunpack.c.l.b16 %v287
    %v327 = vunpack.c.h.b16 %v287
    %v328 = vunpack.c.l.b16 %v288
    %v329 = vunpack.c.h.b16 %v288
    %v330 = vunpack.c.l.b16 %v289
    %v331 = vunpack.c.h.b16 %v289
    %v332 = vunpack.c.l.b16 %v290
    %v333 = vunpack.c.h.b16 %v290
    %v334 = vunpack.c.l.b16 %v291
    %v335 = vunpack.c.h.b16 %v291
    %v336 = vunpack.c.l.b16 %v292
    %v337 = vunpack.c.h.b16 %v292
    %v338 = vunpack.c.l.b16 %v293
    %v339 = vunpack.c.h.b16 %v293
    %v340 = vunpack.c.l.b16 %v294
    %v341 = vunpack.c.h.b16 %v294
    %v342 = vunpack.c.l.b16 %v295
    %v343 = vunpack.c.h.b16 %v295
    %v344 = vunpack.c.l.b16 %v296
    %v345 = vunpack.c.h.b16 %v296
    %v346 = vunpack.c.l.b16 %v297
    %v347 = vunpack.c.h.b16 %v297
    %v348 = vunpack.c.l.b16 %v298
    %v349 = vunpack.c.h.b16 %v298
    %v350 = vunpack.c.l.b16 %v299
    %v351 = vunpack.c.h.b16 %v299
    %v352 = vunpack.c.l.b16 %v300
    %v353 = vunpack.c.h.b16 %v300
    %v354 = vpack.c.b16 %v324, %v322
    %v355 = vpack.c.b16 %v325, %v323
    %v356 = vpack.c.b16 %v328, %v326
    %v357 = vpack.c.b16 %v329, %v327
    %v358 = vpack.c.b16 %v332, %v330
    %v359 = vpack.c.b16 %v333, %v331
    %v360 = vpack.c.b16 %v336, %v334
    %v361 = vpack.c.b16 %v337, %v335
    %v362 = vpack.c.b16 %v340, %v338
    %v363 = vpack.c.b16 %v341, %v339
    %v364 = vpack.c.b16 %v344, %v342
    %v365 = vpack.c.b16 %v345, %v343
    %v366 = vpack.c.b16 %v348, %v346
    %v367 = vpack.c.b16 %v349, %v347
    %v368 = vpack.c.b16 %v352, %v350
    %v369 = vpack.c.b16 %v353, %v351
    %386 = vmatpush.bf16.msra.mxu0 %v368
    %387 = vmatpush.bf16.msra.mxu0 %v366
    %388 = vmatpush.bf16.msra.mxu0 %v364
    %389 = vmatpush.bf16.msra.mxu0 %v362
    %390 = vmatpush.bf16.msra.mxu0 %v360
    %391 = vmatpush.bf16.msra.mxu0 %v358
    %392 = vmatpush.bf16.msra.mxu0 %v356
    %393 = vmatpush.bf16.msra.mxu0 %v354
    %394 = vmatmul.bf16.gmra.mxu0 %v284
    %v395 = vpop.f32.mrf.mxu0
    %v396 = vadd.f32 %v302, %v395
    %v397 = vpop.f32.mrf.mxu0
    %398 = vdwg.mxu0
    %399 = vmatpush.bf16.msra.mxu0 %v369
    %400 = vmatpush.bf16.msra.mxu0 %v367
    %401 = vmatpush.bf16.msra.mxu0 %v365
    %402 = vmatpush.bf16.msra.mxu0 %v363
    %403 = vmatpush.bf16.msra.mxu0 %v361
    %404 = vmatpush.bf16.msra.mxu0 %v359
    %405 = vmatpush.bf16.msra.mxu0 %v357
    %406 = vmatpush.bf16.msra.mxu0 %v355
    %407 = vmatmul.bf16.gmra.mxu0 %v284
    %v408 = vpop.f32.mrf.mxu0
    %v409 = vadd.f32 %v303, %v408
    %v410 = vpop.f32.mrf.mxu0
    %411 = vdwg.mxu0
    %v412 = vmul.f32 %v396, %v152
    %v413 = vmul.f32 %v409, %v153
    %v414 = vadd.f32 %v265, %v412
    %v415 = vadd.f32 %v278, %v413
    %v416 = vmax.f32 %v414, 0.0
    %v417 = vmax.f32 %v415, 0.0
    %v418 = vld [vmem:[%s6 + $0x3] ss:$0 sm:$0xff]
    %v419 = vld [vmem:[%s6 + $0x4] ss:$0 sm:$0xff]
    %v420 = vpack.c.bf16 %v417, %v416
    %s421 = sadd.s32 %s59, 3
    %v422 = vstv %s421
    %v423 = vxor.u32 %v101, %v422
    %v424 = vxor.u32 %v122, %v422
    %v425 = vshra.s32 %v423, 16
    %v426 = vshra.s32 %v424, 16
    %v427 = vand.u32 %v425, 65535
    %v428 = vand.u32 %v426, 65535
    %v429 = vxor.u32 %v423, %v427
    %v430 = vxor.u32 %v424, %v428
    %v431 = vmul.u32 %v429, 2146121005
    %v432 = vmul.u32 %v430, 2146121005
    %v433 = vshra.s32 %v431, 15
    %v434 = vshra.s32 %v432, 15
    %v435 = vand.u32 %v433, 131071
    %v436 = vand.u32 %v434, 131071
    %v437 = vxor.u32 %v431, %v435
    %v438 = vxor.u32 %v432, %v436
    %v439 = vmul.u32 %v437, 2221713035
    %v440 = vmul.u32 %v438, 2221713035
    %v441 = vshra.s32 %v439, 16
    %v442 = vshra.s32 %v440, 16
    %v443 = vand.u32 %v441, 65535
    %v444 = vand.u32 %v442, 65535
    %v445 = vxor.u32 %v439, %v443
    %v446 = vxor.u32 %v440, %v444
    %v447 = vand.u32 %v445, 1
    %v448 = vand.u32 %v446, 1
    %vm449 = vcmp.eq.s32.totalorder %v447, 0
    %vm450 = vcmp.eq.s32.totalorder %v448, 0
    %v451 = vsel %vm449, 1.0, -1.0
    %v452 = vsel %vm450, 1.0, -1.0
    %v453 = vpack.c.bf16 %v452, %v451
    %s454 = sadd.s32 %s59, 4
    %v455 = vstv %s454
    %v456 = vxor.u32 %v101, %v455
    %v457 = vshra.s32 %v456, 16
    %v458 = vand.u32 %v457, 65535
    %v459 = vxor.u32 %v456, %v458
    %v460 = vmul.u32 %v459, 2146121005
    %v461 = vshra.s32 %v460, 15
    %v462 = vand.u32 %v461, 131071
    %v463 = vxor.u32 %v460, %v462
    %v464 = vmul.u32 %v463, 2221713035
    %v465 = vshra.s32 %v464, 16
    %v466 = vand.u32 %v465, 65535
    %v467 = vxor.u32 %v464, %v466
    %v468 = vand.u32 %v467, 1
    %vm469 = vcmp.eq.s32.totalorder %v468, 0
    %v470 = vsel %vm469, 1.0, -1.0
    %v471 = vld [vmem:[#allocation6] sm:$0xf]
    %v472 = vld [vmem:[#allocation6 + $0x4] sm:$0xf]
    %v473 = vld [vmem:[#allocation6 + $0x8] sm:$0xf]
    %v474 = vld [vmem:[#allocation6 + $0xc] sm:$0xf]
    %v475 = vld [vmem:[#allocation6 + $0x10] sm:$0xf]
    %v476 = vld [vmem:[#allocation6 + $0x14] sm:$0xf]
    %v477 = vld [vmem:[#allocation6 + $0x18] sm:$0xf]
    %v478 = vld [vmem:[#allocation6 + $0x1c] sm:$0xf]
    %v479 = vld [vmem:[#allocation6 + $0x20] sm:$0xf]
    %v480 = vld [vmem:[#allocation6 + $0x24] sm:$0xf]
    %v481 = vld [vmem:[#allocation6 + $0x28] sm:$0xf]
    %v482 = vld [vmem:[#allocation6 + $0x2c] sm:$0xf]
    %v483 = vld [vmem:[#allocation6 + $0x30] sm:$0xf]
    %v484 = vld [vmem:[#allocation6 + $0x34] sm:$0xf]
    %v485 = vld [vmem:[#allocation6 + $0x38] sm:$0xf]
    %v486 = vld [vmem:[#allocation6 + $0x3c] sm:$0xf]
    %v487 = vld [vmem:[#allocation6 + $0x40] sm:$0xf]
    %v488 = vld [vmem:[#allocation6 + $0x44] sm:$0xf]
    %v489 = vld [vmem:[#allocation6 + $0x48] sm:$0xf]
    %v490 = vld [vmem:[#allocation6 + $0x4c] sm:$0xf]
    %v491 = vld [vmem:[#allocation6 + $0x50] sm:$0xf]
    %v492 = vld [vmem:[#allocation6 + $0x54] sm:$0xf]
    %v493 = vld [vmem:[#allocation6 + $0x58] sm:$0xf]
    %v494 = vld [vmem:[#allocation6 + $0x5c] sm:$0xf]
    %v495 = vld [vmem:[#allocation6 + $0x60] sm:$0xf]
    %v496 = vld [vmem:[#allocation6 + $0x64] sm:$0xf]
    %v497 = vld [vmem:[#allocation6 + $0x68] sm:$0xf]
    %v498 = vld [vmem:[#allocation6 + $0x6c] sm:$0xf]
    %v499 = vld [vmem:[#allocation6 + $0x70] sm:$0xf]
    %v500 = vld [vmem:[#allocation6 + $0x74] sm:$0xf]
    %v501 = vld [vmem:[#allocation6 + $0x78] sm:$0xf]
    %v502 = vld [vmem:[#allocation6 + $0x7c] sm:$0xf]
    %v504 = vunpack.c.l.b16 %v420
    %v505 = vunpack.c.h.b16 %v420
    %v506 = vpack.c.b16 %v504, %v504
    %v507 = vpack.c.b16 %v505, %v505
    %v542 = vunpack.c.l.b16 %v471
    %v543 = vunpack.c.l.b16 %v472
    %v544 = vunpack.c.l.b16 %v473
    %v545 = vunpack.c.l.b16 %v474
    %v546 = vunpack.c.l.b16 %v475
    %v547 = vunpack.c.l.b16 %v476
    %v548 = vunpack.c.l.b16 %v477
    %v549 = vunpack.c.l.b16 %v478
    %v550 = vunpack.c.l.b16 %v479
    %v551 = vunpack.c.l.b16 %v480
    %v552 = vunpack.c.l.b16 %v481
    %v553 = vunpack.c.l.b16 %v482
    %v554 = vunpack.c.l.b16 %v483
    %v555 = vunpack.c.l.b16 %v484
    %v556 = vunpack.c.l.b16 %v485
    %v557 = vunpack.c.l.b16 %v486
    %v558 = vunpack.c.l.b16 %v487
    %v559 = vunpack.c.l.b16 %v488
    %v560 = vunpack.c.l.b16 %v489
    %v561 = vunpack.c.l.b16 %v490
    %v562 = vunpack.c.l.b16 %v491
    %v563 = vunpack.c.l.b16 %v492
    %v564 = vunpack.c.l.b16 %v493
    %v565 = vunpack.c.l.b16 %v494
    %v566 = vunpack.c.l.b16 %v495
    %v567 = vunpack.c.l.b16 %v496
    %v568 = vunpack.c.l.b16 %v497
    %v569 = vunpack.c.l.b16 %v498
    %v570 = vunpack.c.l.b16 %v499
    %v571 = vunpack.c.l.b16 %v500
    %v572 = vunpack.c.l.b16 %v501
    %v573 = vunpack.c.l.b16 %v502
    %v574 = vpack.c.b16 %v543, %v542
    %v575 = vpack.c.b16 %v545, %v544
    %v576 = vpack.c.b16 %v547, %v546
    %v577 = vpack.c.b16 %v549, %v548
    %v578 = vpack.c.b16 %v551, %v550
    %v579 = vpack.c.b16 %v553, %v552
    %v580 = vpack.c.b16 %v555, %v554
    %v581 = vpack.c.b16 %v557, %v556
    %v582 = vpack.c.b16 %v559, %v558
    %v583 = vpack.c.b16 %v561, %v560
    %v584 = vpack.c.b16 %v563, %v562
    %v585 = vpack.c.b16 %v565, %v564
    %v586 = vpack.c.b16 %v567, %v566
    %v587 = vpack.c.b16 %v569, %v568
    %v588 = vpack.c.b16 %v571, %v570
    %v589 = vpack.c.b16 %v573, %v572
    %606 = vmatpush.bf16.msra.mxu0 %v581
    %607 = vmatpush.bf16.msra.mxu0 %v580
    %608 = vmatpush.bf16.msra.mxu0 %v579
    %609 = vmatpush.bf16.msra.mxu0 %v578
    %610 = vmatpush.bf16.msra.mxu0 %v577
    %611 = vmatpush.bf16.msra.mxu0 %v576
    %612 = vmatpush.bf16.msra.mxu0 %v575
    %613 = vmatpush.bf16.msra.mxu0 %v574
    %614 = vmatmul.bf16.gmra.mxu0 %v506
    %v615 = vpop.f32.mrf.mxu0
    %v616 = vadd.f32 %v418, %v615
    %v617 = vpop.f32.mrf.mxu0
    %618 = vdwg.mxu0
    %619 = vmatpush.bf16.msra.mxu0 %v589
    %620 = vmatpush.bf16.msra.mxu0 %v588
    %621 = vmatpush.bf16.msra.mxu0 %v587
    %622 = vmatpush.bf16.msra.mxu0 %v586
    %623 = vmatpush.bf16.msra.mxu0 %v585
    %624 = vmatpush.bf16.msra.mxu0 %v584
    %625 = vmatpush.bf16.msra.mxu0 %v583
    %626 = vmatpush.bf16.msra.mxu0 %v582
    %627 = vmatmul.bf16.gmra.mxu0 %v507
    %v628 = vpop.f32.mrf.mxu0
    %v629 = vadd.f32 %v616, %v628
    %v630 = vpop.f32.mrf.mxu0
    %631 = vdwg.mxu0
    %v632 = vunpack.c.l.bf16 %v420
    %v633 = vunpack.c.h.bf16 %v420
    %v634 = vunpack.c.l.bf16 %v453
    %v635 = vunpack.c.h.bf16 %v453
    %v636 = vmul.f32 %v632, %v634
    %v637 = vmul.f32 %v633, %v635
    %v638 = vpack.c.bf16 %v636, %v636
    %v639 = vpack.c.bf16 %v637, %v637
    %v640 = vld [vmem:[#allocation6 + $0x80] sm:$0xf]
    %v641 = vld [vmem:[#allocation6 + $0x84] sm:$0xf]
    %v642 = vld [vmem:[#allocation6 + $0x88] sm:$0xf]
    %v643 = vld [vmem:[#allocation6 + $0x8c] sm:$0xf]
    %v644 = vld [vmem:[#allocation6 + $0x90] sm:$0xf]
    %v645 = vld [vmem:[#allocation6 + $0x94] sm:$0xf]
    %v646 = vld [vmem:[#allocation6 + $0x98] sm:$0xf]
    %v647 = vld [vmem:[#allocation6 + $0x9c] sm:$0xf]
    %v648 = vld [vmem:[#allocation6 + $0xa0] sm:$0xf]
    %v649 = vld [vmem:[#allocation6 + $0xa4] sm:$0xf]
    %v650 = vld [vmem:[#allocation6 + $0xa8] sm:$0xf]
    %v651 = vld [vmem:[#allocation6 + $0xac] sm:$0xf]
    %v652 = vld [vmem:[#allocation6 + $0xb0] sm:$0xf]
    %v653 = vld [vmem:[#allocation6 + $0xb4] sm:$0xf]
    %v654 = vld [vmem:[#allocation6 + $0xb8] sm:$0xf]
    %v655 = vld [vmem:[#allocation6 + $0xbc] sm:$0xf]
    %v656 = vld [vmem:[#allocation6 + $0xc0] sm:$0xf]
    %v657 = vld [vmem:[#allocation6 + $0xc4] sm:$0xf]
    %v658 = vld [vmem:[#allocation6 + $0xc8] sm:$0xf]
    %v659 = vld [vmem:[#allocation6 + $0xcc] sm:$0xf]
    %v660 = vld [vmem:[#allocation6 + $0xd0] sm:$0xf]
    %v661 = vld [vmem:[#allocation6 + $0xd4] sm:$0xf]
    %v662 = vld [vmem:[#allocation6 + $0xd8] sm:$0xf]
    %v663 = vld [vmem:[#allocation6 + $0xdc] sm:$0xf]
    %v664 = vld [vmem:[#allocation6 + $0xe0] sm:$0xf]
    %v665 = vld [vmem:[#allocation6 + $0xe4] sm:$0xf]
    %v666 = vld [vmem:[#allocation6 + $0xe8] sm:$0xf]
    %v667 = vld [vmem:[#allocation6 + $0xec] sm:$0xf]
    %v668 = vld [vmem:[#allocation6 + $0xf0] sm:$0xf]
    %v669 = vld [vmem:[#allocation6 + $0xf4] sm:$0xf]
    %v670 = vld [vmem:[#allocation6 + $0xf8] sm:$0xf]
    %v671 = vld [vmem:[#allocation6 + $0xfc] sm:$0xf]
    %v704 = vunpack.c.l.b16 %v640
    %v705 = vunpack.c.l.b16 %v641
    %v706 = vunpack.c.l.b16 %v642
    %v707 = vunpack.c.l.b16 %v643
    %v708 = vunpack.c.l.b16 %v644
    %v709 = vunpack.c.l.b16 %v645
    %v710 = vunpack.c.l.b16 %v646
    %v711 = vunpack.c.l.b16 %v647
    %v712 = vunpack.c.l.b16 %v648
    %v713 = vunpack.c.l.b16 %v649
    %v714 = vunpack.c.l.b16 %v650
    %v715 = vunpack.c.l.b16 %v651
    %v716 = vunpack.c.l.b16 %v652
    %v717 = vunpack.c.l.b16 %v653
    %v718 = vunpack.c.l.b16 %v654
    %v719 = vunpack.c.l.b16 %v655
    %v720 = vunpack.c.l.b16 %v656
    %v721 = vunpack.c.l.b16 %v657
    %v722 = vunpack.c.l.b16 %v658
    %v723 = vunpack.c.l.b16 %v659
    %v724 = vunpack.c.l.b16 %v660
    %v725 = vunpack.c.l.b16 %v661
    %v726 = vunpack.c.l.b16 %v662
    %v727 = vunpack.c.l.b16 %v663
    %v728 = vunpack.c.l.b16 %v664
    %v729 = vunpack.c.l.b16 %v665
    %v730 = vunpack.c.l.b16 %v666
    %v731 = vunpack.c.l.b16 %v667
    %v732 = vunpack.c.l.b16 %v668
    %v733 = vunpack.c.l.b16 %v669
    %v734 = vunpack.c.l.b16 %v670
    %v735 = vunpack.c.l.b16 %v671
    %v736 = vpack.c.b16 %v705, %v704
    %v737 = vpack.c.b16 %v707, %v706
    %v738 = vpack.c.b16 %v709, %v708
    %v739 = vpack.c.b16 %v711, %v710
    %v740 = vpack.c.b16 %v713, %v712
    %v741 = vpack.c.b16 %v715, %v714
    %v742 = vpack.c.b16 %v717, %v716
    %v743 = vpack.c.b16 %v719, %v718
    %v744 = vpack.c.b16 %v721, %v720
    %v745 = vpack.c.b16 %v723, %v722
    %v746 = vpack.c.b16 %v725, %v724
    %v747 = vpack.c.b16 %v727, %v726
    %v748 = vpack.c.b16 %v729, %v728
    %v749 = vpack.c.b16 %v731, %v730
    %v750 = vpack.c.b16 %v733, %v732
    %v751 = vpack.c.b16 %v735, %v734
    %768 = vmatpush.bf16.msra.mxu0 %v743
    %769 = vmatpush.bf16.msra.mxu0 %v742
    %770 = vmatpush.bf16.msra.mxu0 %v741
    %771 = vmatpush.bf16.msra.mxu0 %v740
    %772 = vmatpush.bf16.msra.mxu0 %v739
    %773 = vmatpush.bf16.msra.mxu0 %v738
    %774 = vmatpush.bf16.msra.mxu0 %v737
    %775 = vmatpush.bf16.msra.mxu0 %v736
    %776 = vmatmul.bf16.gmra.mxu0 %v638
    %v777 = vpop.f32.mrf.mxu0
    %v778 = vadd.f32 %v419, %v777
    %v779 = vpop.f32.mrf.mxu0
    %780 = vdwg.mxu0
    %781 = vmatpush.bf16.msra.mxu0 %v751
    %782 = vmatpush.bf16.msra.mxu0 %v750
    %783 = vmatpush.bf16.msra.mxu0 %v749
    %784 = vmatpush.bf16.msra.mxu0 %v748
    %785 = vmatpush.bf16.msra.mxu0 %v747
    %786 = vmatpush.bf16.msra.mxu0 %v746
    %787 = vmatpush.bf16.msra.mxu0 %v745
    %788 = vmatpush.bf16.msra.mxu0 %v744
    %789 = vmatmul.bf16.gmra.mxu0 %v639
    %v790 = vpop.f32.mrf.mxu0
    %v791 = vadd.f32 %v778, %v790
    %v792 = vpop.f32.mrf.mxu0
    %793 = vdwg.mxu0
    %v794 = vmul.f32 %v791, %v470
    %v795 = vadd.f32 %v629, %v794
    %v796 = vmax.f32 %v795, 0.0
    %v797 = vld [vmem:[%s6 + $0x5] ss:$0 sm:$0xff]
    %v798 = vld [vmem:[%s6 + $0x6] ss:$0 sm:$0xff]
    %v799 = vpack.c.bf16 %v796, %v796
    %s800 = sadd.s32 %s59, 5
    %v801 = vstv %s800
    %v802 = vxor.u32 %v101, %v801
    %v803 = vshra.s32 %v802, 16
    %v804 = vand.u32 %v803, 65535
    %v805 = vxor.u32 %v802, %v804
    %v806 = vmul.u32 %v805, 2146121005
    %v807 = vshra.s32 %v806, 15
    %v808 = vand.u32 %v807, 131071
    %v809 = vxor.u32 %v806, %v808
    %v810 = vmul.u32 %v809, 2221713035
    %v811 = vshra.s32 %v810, 16
    %v812 = vand.u32 %v811, 65535
    %v813 = vxor.u32 %v810, %v812
    %v814 = vand.u32 %v813, 1
    %vm815 = vcmp.eq.s32.totalorder %v814, 0
    %v816 = vsel %vm815, 1.0, -1.0
    %v817 = vpack.c.bf16 %v816, %v816
    %s818 = sadd.s32 %s59, 6
    %v819 = vstv %s818
    %v820 = vxor.u32 %v101, %v819
    %v821 = vshra.s32 %v820, 16
    %v822 = vand.u32 %v821, 65535
    %v823 = vxor.u32 %v820, %v822
    %v824 = vmul.u32 %v823, 2146121005
    %v825 = vshra.s32 %v824, 15
    %v826 = vand.u32 %v825, 131071
    %v827 = vxor.u32 %v824, %v826
    %v828 = vmul.u32 %v827, 2221713035
    %v829 = vshra.s32 %v828, 16
    %v830 = vand.u32 %v829, 65535
    %v831 = vxor.u32 %v828, %v830
    %v832 = vand.u32 %v831, 1
    %vm833 = vcmp.eq.s32.totalorder %v832, 0
    %v834 = vsel %vm833, 1.0, -1.0
    %v835 = vld [vmem:[%s5] sm:$0xf]
    %v836 = vld [vmem:[%s5 + $0x4] sm:$0xf]
    %v837 = vld [vmem:[%s5 + $0x8] sm:$0xf]
    %v838 = vld [vmem:[%s5 + $0xc] sm:$0xf]
    %v839 = vld [vmem:[%s5 + $0x10] sm:$0xf]
    %v840 = vld [vmem:[%s5 + $0x14] sm:$0xf]
    %v841 = vld [vmem:[%s5 + $0x18] sm:$0xf]
    %v842 = vld [vmem:[%s5 + $0x1c] sm:$0xf]
    %v843 = vld [vmem:[%s5 + $0x20] sm:$0xf]
    %v844 = vld [vmem:[%s5 + $0x24] sm:$0xf]
    %v845 = vld [vmem:[%s5 + $0x28] sm:$0xf]
    %v846 = vld [vmem:[%s5 + $0x2c] sm:$0xf]
    %v847 = vld [vmem:[%s5 + $0x30] sm:$0xf]
    %v848 = vld [vmem:[%s5 + $0x34] sm:$0xf]
    %v849 = vld [vmem:[%s5 + $0x38] sm:$0xf]
    %v850 = vld [vmem:[%s5 + $0x3c] sm:$0xf]
    %v867 = vunpack.c.l.b16 %v835
    %v868 = vunpack.c.l.b16 %v836
    %v869 = vunpack.c.l.b16 %v837
    %v870 = vunpack.c.l.b16 %v838
    %v871 = vunpack.c.l.b16 %v839
    %v872 = vunpack.c.l.b16 %v840
    %v873 = vunpack.c.l.b16 %v841
    %v874 = vunpack.c.l.b16 %v842
    %v875 = vunpack.c.l.b16 %v843
    %v876 = vunpack.c.l.b16 %v844
    %v877 = vunpack.c.l.b16 %v845
    %v878 = vunpack.c.l.b16 %v846
    %v879 = vunpack.c.l.b16 %v847
    %v880 = vunpack.c.l.b16 %v848
    %v881 = vunpack.c.l.b16 %v849
    %v882 = vunpack.c.l.b16 %v850
    %v883 = vpack.c.b16 %v868, %v867
    %v884 = vpack.c.b16 %v870, %v869
    %v885 = vpack.c.b16 %v872, %v871
    %v886 = vpack.c.b16 %v874, %v873
    %v887 = vpack.c.b16 %v876, %v875
    %v888 = vpack.c.b16 %v878, %v877
    %v889 = vpack.c.b16 %v880, %v879
    %v890 = vpack.c.b16 %v882, %v881
    %899 = vmatpush.bf16.msra.mxu0 %v890
    %900 = vmatpush.bf16.msra.mxu0 %v889
    %901 = vmatpush.bf16.msra.mxu0 %v888
    %902 = vmatpush.bf16.msra.mxu0 %v887
    %903 = vmatpush.bf16.msra.mxu0 %v886
    %904 = vmatpush.bf16.msra.mxu0 %v885
    %905 = vmatpush.bf16.msra.mxu0 %v884
    %906 = vmatpush.bf16.msra.mxu0 %v883
    %907 = vmatmul.bf16.gmra.mxu0 %v799
    %v908 = vpop.f32.mrf.mxu0
    %v909 = vadd.f32 %v797, %v908
    %v910 = vpop.f32.mrf.mxu0
    %911 = vdwg.mxu0
    %v912 = vunpack.c.l.bf16 %v799
    %v913 = vunpack.c.l.bf16 %v817
    %v914 = vmul.f32 %v912, %v913
    %v915 = vpack.c.bf16 %v914, %v914
    %v916 = vld [vmem:[%s5 + $0x40] sm:$0xf]
    %v917 = vld [vmem:[%s5 + $0x44] sm:$0xf]
    %v918 = vld [vmem:[%s5 + $0x48] sm:$0xf]
    %v919 = vld [vmem:[%s5 + $0x4c] sm:$0xf]
    %v920 = vld [vmem:[%s5 + $0x50] sm:$0xf]
    %v921 = vld [vmem:[%s5 + $0x54] sm:$0xf]
    %v922 = vld [vmem:[%s5 + $0x58] sm:$0xf]
    %v923 = vld [vmem:[%s5 + $0x5c] sm:$0xf]
    %v924 = vld [vmem:[%s5 + $0x60] sm:$0xf]
    %v925 = vld [vmem:[%s5 + $0x64] sm:$0xf]
    %v926 = vld [vmem:[%s5 + $0x68] sm:$0xf]
    %v927 = vld [vmem:[%s5 + $0x6c] sm:$0xf]
    %v928 = vld [vmem:[%s5 + $0x70] sm:$0xf]
    %v929 = vld [vmem:[%s5 + $0x74] sm:$0xf]
    %v930 = vld [vmem:[%s5 + $0x78] sm:$0xf]
    %v931 = vld [vmem:[%s5 + $0x7c] sm:$0xf]
    %v948 = vunpack.c.l.b16 %v916
    %v949 = vunpack.c.l.b16 %v917
    %v950 = vunpack.c.l.b16 %v918
    %v951 = vunpack.c.l.b16 %v919
    %v952 = vunpack.c.l.b16 %v920
    %v953 = vunpack.c.l.b16 %v921
    %v954 = vunpack.c.l.b16 %v922
    %v955 = vunpack.c.l.b16 %v923
    %v956 = vunpack.c.l.b16 %v924
    %v957 = vunpack.c.l.b16 %v925
    %v958 = vunpack.c.l.b16 %v926
    %v959 = vunpack.c.l.b16 %v927
    %v960 = vunpack.c.l.b16 %v928
    %v961 = vunpack.c.l.b16 %v929
    %v962 = vunpack.c.l.b16 %v930
    %v963 = vunpack.c.l.b16 %v931
    %v964 = vpack.c.b16 %v949, %v948
    %v965 = vpack.c.b16 %v951, %v950
    %v966 = vpack.c.b16 %v953, %v952
    %v967 = vpack.c.b16 %v955, %v954
    %v968 = vpack.c.b16 %v957, %v956
    %v969 = vpack.c.b16 %v959, %v958
    %v970 = vpack.c.b16 %v961, %v960
    %v971 = vpack.c.b16 %v963, %v962
    %980 = vmatpush.bf16.msra.mxu0 %v971
    %981 = vmatpush.bf16.msra.mxu0 %v970
    %982 = vmatpush.bf16.msra.mxu0 %v969
    %983 = vmatpush.bf16.msra.mxu0 %v968
    %984 = vmatpush.bf16.msra.mxu0 %v967
    %985 = vmatpush.bf16.msra.mxu0 %v966
    %986 = vmatpush.bf16.msra.mxu0 %v965
    %987 = vmatpush.bf16.msra.mxu0 %v964
    %988 = vmatmul.bf16.gmra.mxu0 %v915
    %v989 = vpop.f32.mrf.mxu0
    %v990 = vadd.f32 %v798, %v989
    %v991 = vpop.f32.mrf.mxu0
    %992 = vdwg.mxu0
    %v993 = vmul.f32 %v990, %v834
    %v994 = vadd.f32 %v909, %v993
    %v995 = vmax.f32 %v994, 0.0
    %v996 = vld [vmem:[%s6 + $0x7] ss:$0 sm:$0xff]
    %v997 = vld [vmem:[%s6 + $0x10] ss:$0 sm:$0xff]
    %v998 = vld [vmem:[%s6 + $0x11] ss:$0 sm:$0xff]
    %v999 = vld [vmem:[%s6 + $0x12] ss:$0 sm:$0xff]
    %s1000 = sadd.s32 %s59, 7
    %v1001 = vstv %s1000
    %v1002 = vxor.u32 %v101, %v1001
    %v1003 = vshra.s32 %v1002, 16
    %v1004 = vand.u32 %v1003, 65535
    %v1005 = vxor.u32 %v1002, %v1004
    %v1006 = vmul.u32 %v1005, 2146121005
    %v1007 = vshra.s32 %v1006, 15
    %v1008 = vand.u32 %v1007, 131071
    %v1009 = vxor.u32 %v1006, %v1008
    %v1010 = vmul.u32 %v1009, 2221713035
    %v1011 = vshra.s32 %v1010, 16
    %v1012 = vand.u32 %v1011, 65535
    %v1013 = vxor.u32 %v1010, %v1012
    %v1014 = vand.u32 %v1013, 1
    %vm1015 = vcmp.eq.s32.totalorder %v1014, 0
    %v1016 = vsel %vm1015, 1.0, -1.0
    %s1017 = sadd.s32 %s59, 8
    %v1018 = vstv %s1017
    %v1019 = vxor.u32 %v101, %v1018
    %v1020 = vshra.s32 %v1019, 16
    %v1021 = vand.u32 %v1020, 65535
    %v1022 = vxor.u32 %v1019, %v1021
    %v1023 = vmul.u32 %v1022, 2146121005
    %v1024 = vshra.s32 %v1023, 15
    %v1025 = vand.u32 %v1024, 131071
    %v1026 = vxor.u32 %v1023, %v1025
    %v1027 = vmul.u32 %v1026, 2221713035
    %v1028 = vshra.s32 %v1027, 16
    %v1029 = vand.u32 %v1028, 65535
    %v1030 = vxor.u32 %v1027, %v1029
    %v1031 = vand.u32 %v1030, 1
    %vm1032 = vcmp.eq.s32.totalorder %v1031, 0
    %v1033 = vsel %vm1032, 1.0, -1.0
    %1035 = vset.pattern.permute.xlu0 0
    %1036 = vperm.xlu0 %1035, %v1033
    %v1037 = vpop.permute.xlu0 %1036
    %v1039 = vmul.f32 %v1016, %v1037
    %v1040 = vmul.f32 %v1039, %v997
    %v1041 = vadd.f32 %v996, %v1040
    %v1042 = vmul.f32 %v995, %v1041
    %vm1043 = vcmask 523264
    %v1044 = vsel %vm1043, %v1042, 0.0
    %1045 = vadd.xlane.f32.xlu0 %v1044
    %v1046 = vpop.xlane.xlu0 %1045
    %v1047 = vadd.f32 %v1046, %v998
    %v1048 = vmul.f32 %v999, %v1033
    %v1049 = vadd.f32 %v1047, %v1048
    %vm1050 = vcmask 7168
    %1051 = vst.msk [vmem:[%s7] sm:$0xff] %vm1050, %v1049
    // Predicated region
    $region34: #{tpu_custom_call.1} parent=1 // pred_check
      _
    $region35: #{tpu_custom_call.1} parent=1 // pred_check_branch
      %1053 = sbr.rel (0) target = $region37
    $region36: #{tpu_custom_call.1} parent=1 // pred_region
      _
    $region37: #{tpu_custom_call.1} parent=1 // pred_fallthru
      _
    // Predicated region
    $region38: #{tpu_custom_call.1} parent=1 // pred_check
      _
    $region39: #{tpu_custom_call.1} parent=1 // pred_check_branch
      %1055 = sbr.rel (0) target = $region41
    $region40: #{tpu_custom_call.1} parent=1 // pred_region
      _
    $region41: #{tpu_custom_call.1} parent=1 // pred_fallthru
      _
    %1056 = vsyncpa [#allocation5], 1
    %1057 = vsyncpa [#allocation7], 1

</llo_original>
